<compile_context>
chip_gen: v5e
topology: v5e:2x2
jax: 0.10.0
libtpu: 0.0.40
codegen_flags: <defaults>
</compile_context>

<pallas_src>
import functools

import jax
import jax.numpy as jnp
from jax.experimental import pallas as pl
from jax.experimental.pallas import tpu as pltpu


def _lstm_kernel(x_ref, h0_ref, c0_ref, wih_ref, whh_ref, b_ref,
                 wfc_ref, bfc_ref,
                 y_ref, ht_ref, ct_ref,
                 gates_ref,
                 *, seq_len, batch, hp):
    """Single-invocation LSTM recurrence + fc head.

    x_ref    : (S*Bp, I)     matmul dtype (bf16 default, f32 optional)
    h0/c0    : (Bp, Hp)      f32
    wih_ref  : (I, 4*Hp)     matmul dtype  (per-gate zero-padded cols, g-slab *2)
    whh_ref  : (Hp, 4*Hp)    matmul dtype  (zero-padded rows, g-slab *2)
    b_ref    : (1, 4*Hp)     f32           (g-slab *2)
    wfc_ref  : (Hp, Op)      matmul dtype
    bfc_ref  : (1, Op)       f32
    gates_ref: (S*Bp, 4*Hp)  f32 VMEM scratch (hoisted input projection)
    outputs  : y (Bp, Op), h_T (Bp, Hp), c_T (Bp, Hp)   all f32
    """
    mm_dtype = whh_ref.dtype

    # ---- hoisted, time-parallel input projection: one matmul, staged in VMEM
    # scratch so the (S*Bp, 4*Hp) result is never live as a value across the
    # unrolled recurrence (avoids vreg spills on the serial path).
    gates_ref[...] = (
        jnp.dot(x_ref[...], wih_ref[...], preferred_element_type=jnp.float32)
        + b_ref[...])

    h = h0_ref[...]                                # (Bp, Hp) f32 — 1 vreg
    c = c0_ref[...]                                # (Bp, Hp) f32 — 1 vreg

    # ---- fully unrolled serial recurrence; only h @ W_hh is on the critical
    # path.  W_hh is re-read from its VMEM ref each step (short live range,
    # streamed straight into the MXU) and the per-step gate slice is a
    # sublane-tile-aligned (Bp=8)-row static slice of the scratch.
    for t in range(seq_len):
        g = (gates_ref[t * batch:(t + 1) * batch, :]
             + jnp.dot(h.astype(mm_dtype), whh_ref[...],
                       preferred_element_type=jnp.float32))   # (Bp, 4*Hp) f32

        # Single fused EUP stream for all four gates.  The wrapper pre-scaled
        # the g-gate slab of W_ih / W_hh / bias by 2, so with tg = tanh(g/2):
        #   i/f/o = sigmoid(z) = 0.5*tg + 0.5      (VPU fixup)
        #   g_g   = tanh(z)    = tg                (slab carried 2z)
        tg = jnp.tanh(0.5 * g)
        i_g = 0.5 * tg[:, 0 * hp:1 * hp] + 0.5
        f_g = 0.5 * tg[:, 1 * hp:2 * hp] + 0.5
        g_g = tg[:, 2 * hp:3 * hp]
        o_g = 0.5 * tg[:, 3 * hp:4 * hp] + 0.5

        c = f_g * c + i_g * g_g
        h = o_g * jnp.tanh(c)

    # ---- fc head on the last hidden state + emit (h_T, c_T), lane-dense.
    y_ref[...] = (jnp.dot(h.astype(mm_dtype), wfc_ref[...],
                          preferred_element_type=jnp.float32)
                  + bfc_ref[...]).astype(y_ref.dtype)
    ht_ref[...] = h.astype(ht_ref.dtype)
    ct_ref[...] = c.astype(ct_ref.dtype)


def lstm_forward(x, hx, params, *, use_bf16=True):
    """x: (S, B, I) f32.  hx = (h0, c0), each (1, B, H).  Returns (y, (h_T, c_T)).

    Matches torch: y = fc(h_T[-1]);  h_T/c_T shaped (n_layer=1, B, H).
    bf16 MXU operands by default (f32 accumulation); pass use_bf16=False for a
    bit-closer f32 path.
    """
    h0, c0 = hx
    S, B, I = x.shape
    H = params["w_hh"].shape[1]          # w_hh: (4H, H)
    O = params["w_fc"].shape[0]          # w_fc: (O, H)

    # Pad each gate / the output dim to a full lane group (multiple of 128) and
    # batch to a full sublane tile (multiple of 8).  If H ever grows, prefer
    # keeping 4*Hp a multiple of 256 (v6e/v7x MXU tile width) — true here.
    Hp = ((H + 127) // 128) * 128
    Op = ((O + 127) // 128) * 128
    Bp = ((B + 7) // 8) * 8

    # Gate order is PyTorch's [i, f, g, o]; the g-gate slab is scaled by 2 so
    # the kernel can use a single tanh(0.5*z) stream for all gates.  The scale
    # is an exact power of two, so it introduces no extra rounding error.
    gate_scale = jnp.array([1.0, 1.0, 2.0, 1.0], jnp.float32).reshape(1, 4, 1)

    # ----- layout prep (plain JAX glue, outside the kernel) -----
    def pad_gate_cols(w_t):              # (in, 4H) -> (in, 4*Hp), per-gate pad
        d = w_t.shape[0]
        w3 = w_t.reshape(d, 4, H) * gate_scale
        return jnp.pad(w3, ((0, 0), (0, 0), (0, Hp - H))).reshape(d, 4 * Hp)

    # NOTE: padded columns of W/bias and padded rows of W_hh/W_fc are exactly
    # zero.  Zero W_hh/W_fc rows guarantee padded h-lanes never contaminate the
    # real outputs, so the wrapper-side [:B, :H]/[:B, :O] slices are exact.
    w_ih_t = pad_gate_cols(params["w_ih"].T)                        # (I, 4Hp)
    w_hh_t = jnp.pad(pad_gate_cols(params["w_hh"].T),
                     ((0, Hp - H), (0, 0)))                         # (Hp, 4Hp)
    bias = jnp.pad((params["b_ih"] + params["b_hh"]).reshape(1, 4, H)
                   * gate_scale,
                   ((0, 0), (0, 0), (0, Hp - H))).reshape(1, 4 * Hp)  # (1, 4Hp)
    w_fc_t = jnp.pad(params["w_fc"].T, ((0, Hp - H), (0, Op - O)))  # (Hp, Op)
    b_fc = jnp.pad(params["b_fc"], (0, Op - O)).reshape(1, Op)      # (1, Op)

    # Batch-pad x / h0 / c0 to Bp rows (zeros); padded rows are independent in
    # every matmul and are sliced off from the outputs below.
    x_p = jnp.pad(x, ((0, 0), (0, Bp - B), (0, 0)))                 # (S, Bp, I)
    x2d = x_p.reshape(S * Bp, I)
    h0p = jnp.pad(h0[0], ((0, Bp - B), (0, Hp - H))).astype(jnp.float32)
    c0p = jnp.pad(c0[0], ((0, Bp - B), (0, Hp - H))).astype(jnp.float32)

    # bf16 MXU operands (single-pass on v5e/v6e/v7x MXUs); all elementwise gate
    # math and the c/h update stay f32 (v5e VPU/EUP have no bf16 datapath).
    mm_dtype = jnp.bfloat16 if use_bf16 else jnp.float32
    x2d = x2d.astype(mm_dtype)
    w_ih_t = w_ih_t.astype(mm_dtype)
    w_hh_t = w_hh_t.astype(mm_dtype)
    w_fc_t = w_fc_t.astype(mm_dtype)
    bias = bias.astype(jnp.float32)
    b_fc = b_fc.astype(jnp.float32)

    kernel = functools.partial(_lstm_kernel, seq_len=S, batch=Bp, hp=Hp)

    out_shapes = (
        jax.ShapeDtypeStruct((Bp, Op), jnp.float32),   # fc(h_T), padded
        jax.ShapeDtypeStruct((Bp, Hp), jnp.float32),   # h_T, padded
        jax.ShapeDtypeStruct((Bp, Hp), jnp.float32),   # c_T, padded
    )

    vmem = pl.BlockSpec(memory_space=pltpu.MemorySpace.VMEM)
    y_pad, h_pad, c_pad = pl.pallas_call(
        kernel,
        out_shape=out_shapes,
        in_specs=[vmem] * 8,              # whole arrays resident in VMEM
        out_specs=(vmem, vmem, vmem),
        scratch_shapes=[pltpu.VMEM((S * Bp, 4 * Hp), jnp.float32)],
    )(x2d, h0p, c0p, w_ih_t, w_hh_t, bias, w_fc_t, b_fc)

    # Strip batch / lane padding (exact: zero-padded weight rows, see NOTE).
    y = y_pad[:B, :O]
    h_t = h_pad[:B, :H][None]             # (1, B, H) to match torch layout
    c_t = c_pad[:B, :H][None]
    return y, (h_t, c_t)


def _ref_lstm(x, hx, params):
    """Pure-JAX reference (same math as torch.nn.LSTM + Linear)."""
    h0, c0 = hx
    H = params["w_hh"].shape[1]
    w_ih_t, w_hh_t = params["w_ih"].T, params["w_hh"].T
    b = params["b_ih"] + params["b_hh"]

    def step(carry, x_t):
        h, c = carry
        g = x_t @ w_ih_t + h @ w_hh_t + b
        i = jax.nn.sigmoid(g[:, 0 * H:1 * H])
        f = jax.nn.sigmoid(g[:, 1 * H:2 * H])
        gg = jnp.tanh(g[:, 2 * H:3 * H])
        o = jax.nn.sigmoid(g[:, 3 * H:4 * H])
        c = f * c + i * gg
        h = o * jnp.tanh(c)
        return (h, c), None

    (h, c), _ = jax.lax.scan(step, (h0[0], c0[0]), x)
    y = h @ params["w_fc"].T + params["b_fc"]
    return y, (h[None], c[None])


if __name__ == "__main__":
    # Small shapes consistent with the module: seq=8, batch=2, n_input=4,
    # n_hidden=32, n_output=3, n_layer=1.
    S, B, I, H, O = 8, 2, 4, 32, 3

    key = jax.random.PRNGKey(0)
    ks = jax.random.split(key, 7)
    bound = 1.0 / jnp.sqrt(H)
    params = {
        "w_ih": jax.random.uniform(ks[0], (4 * H, I), jnp.float32, -bound, bound),
        "w_hh": jax.random.uniform(ks[1], (4 * H, H), jnp.float32, -bound, bound),
        "b_ih": jax.random.uniform(ks[2], (4 * H,), jnp.float32, -bound, bound),
        "b_hh": jax.random.uniform(ks[3], (4 * H,), jnp.float32, -bound, bound),
        "w_fc": jax.random.uniform(ks[4], (O, H), jnp.float32, -bound, bound),
        "b_fc": jax.random.uniform(ks[5], (O,), jnp.float32, -bound, bound),
    }

    x = jax.random.normal(ks[6], (S, B, I), jnp.float32)
    h0 = jnp.zeros((1, B, H), jnp.float32)   # == LSTM.initHidden(batch)
    c0 = jnp.zeros((1, B, H), jnp.float32)

    y_ref, (h_ref, c_ref) = _ref_lstm(x, (h0, c0), params)

    # Default path: bf16 MXU operands, f32 accumulation (loose tolerance for
    # bf16 rounding carried through 8 serial recurrence steps).
    y, (h_t, c_t) = lstm_forward(x, (h0, c0), params)
    jax.block_until_ready((y, h_t, c_t))
    assert y.shape == (B, O) and h_t.shape == (1, B, H) and c_t.shape == (1, B, H)
    assert jnp.allclose(y, y_ref, atol=1e-1), "fc output mismatch (bf16)"
    assert jnp.allclose(h_t, h_ref, atol=1e-1), "h_t mismatch (bf16)"
    assert jnp.allclose(c_t, c_ref, atol=1e-1), "c_t mismatch (bf16)"

    # f32-operand path (near-exact check; tiny tolerance covers the
    # sigmoid-via-tanh identity rounding vs jax.nn.sigmoid in the reference).
    y32, (h32, c32) = lstm_forward(x, (h0, c0), params, use_bf16=False)
    jax.block_until_ready((y32, h32, c32))
    assert jnp.allclose(y32, y_ref, atol=1e-4), "fc output mismatch (f32)"
    assert jnp.allclose(h32, h_ref, atol=1e-4), "h_t mismatch (f32)"
    assert jnp.allclose(c32, c_ref, atol=1e-4), "c_t mismatch (f32)"

    print("KERNEL_OK")
</pallas_src>

<mosaic_0001>
module attributes {stable_mosaic.version = 11 : i64} {
  func.func @_lstm_kernel(%arg0: memref<64x4xbf16, #tpu.memory_space<vmem>>, %arg1: memref<8x128xf32, #tpu.memory_space<vmem>>, %arg2: memref<8x128xf32, #tpu.memory_space<vmem>>, %arg3: memref<4x512xbf16, #tpu.memory_space<vmem>>, %arg4: memref<128x512xbf16, #tpu.memory_space<vmem>>, %arg5: memref<1x512xf32, #tpu.memory_space<vmem>>, %arg6: memref<128x128xbf16, #tpu.memory_space<vmem>>, %arg7: memref<1x128xf32, #tpu.memory_space<vmem>>, %arg8: memref<8x128xf32, #tpu.memory_space<vmem>>, %arg9: memref<8x128xf32, #tpu.memory_space<vmem>>, %arg10: memref<8x128xf32, #tpu.memory_space<vmem>>, %arg11: memref<64x512xf32, #tpu.memory_space<vmem>>) attributes {dimension_semantics = [], scalar_prefetch = 0 : i64, scratch_operands = 1 : i64, tpu.core_type = #tpu.core_type<tc>} {
    %c0 = arith.constant 0 : index
    %c0_0 = arith.constant 0 : index
    %0 = vector.load %arg0[%c0, %c0_0] : memref<64x4xbf16, #tpu.memory_space<vmem>>, vector<64x4xbf16>
    %c0_1 = arith.constant 0 : index
    %c0_2 = arith.constant 0 : index
    %1 = vector.load %arg3[%c0_1, %c0_2] : memref<4x512xbf16, #tpu.memory_space<vmem>>, vector<4x512xbf16>
    %cst = arith.constant dense<0.000000e+00> : vector<64x512xf32>
    %2 = tpu.matmul %0, %1, %cst {dimension_numbers = #tpu.dot_dimension_numbers<[1], [0], [0], [1], [0, 0, 1, 1], [], []>} : vector<64x4xbf16>, vector<4x512xbf16>, vector<64x512xf32> -> vector<64x512xf32>
    %c0_3 = arith.constant 0 : index
    %c0_4 = arith.constant 0 : index
    %3 = vector.load %arg5[%c0_3, %c0_4] : memref<1x512xf32, #tpu.memory_space<vmem>>, vector<1x512xf32>
    %4 = vector.broadcast %3 : vector<1x512xf32> to vector<64x512xf32>
    %5 = arith.addf %2, %4 : vector<64x512xf32>
    %c0_5 = arith.constant 0 : index
    %c0_6 = arith.constant 0 : index
    %6 = vector.load %arg11[%c0_5, %c0_6] : memref<64x512xf32, #tpu.memory_space<vmem>>, vector<64x512xf32>
    tpu.vector_store %arg11[%c0_5, %c0_6], %5 {strides = array<i32>} : memref<64x512xf32, #tpu.memory_space<vmem>>, vector<64x512xf32>,
    %c0_7 = arith.constant 0 : index
    %c0_8 = arith.constant 0 : index
    %7 = vector.load %arg1[%c0_7, %c0_8] : memref<8x128xf32, #tpu.memory_space<vmem>>, vector<8x128xf32>
    %c0_9 = arith.constant 0 : index
    %c0_10 = arith.constant 0 : index
    %8 = vector.load %arg2[%c0_9, %c0_10] : memref<8x128xf32, #tpu.memory_space<vmem>>, vector<8x128xf32>
    %c0_11 = arith.constant 0 : index
    %c0_12 = arith.constant 0 : index
    %9 = vector.load %arg11[%c0_11, %c0_12] : memref<64x512xf32, #tpu.memory_space<vmem>>, vector<8x512xf32>
    %10 = arith.truncf %7 : vector<8x128xf32> to vector<8x128xbf16>
    %c0_13 = arith.constant 0 : index
    %c0_14 = arith.constant 0 : index
    %11 = vector.load %arg4[%c0_13, %c0_14] : memref<128x512xbf16, #tpu.memory_space<vmem>>, vector<128x512xbf16>
    %cst_15 = arith.constant dense<0.000000e+00> : vector<8x512xf32>
    %12 = tpu.matmul %10, %11, %cst_15 {dimension_numbers = #tpu.dot_dimension_numbers<[1], [0], [0], [1], [0, 0, 1, 1], [], []>} : vector<8x128xbf16>, vector<128x512xbf16>, vector<8x512xf32> -> vector<8x512xf32>
    %13 = arith.addf %9, %12 : vector<8x512xf32>
    %cst_16 = arith.constant 5.000000e-01 : f32
    %14 = vector.broadcast %cst_16 : f32 to vector<8x512xf32>
    %15 = arith.mulf %14, %13 : vector<8x512xf32>
    %16 = math.tanh %15 : vector<8x512xf32>
    %17 = vector.extract_strided_slice %16 {offsets = [0, 0], sizes = [8, 128], strides = [1, 1]} : vector<8x512xf32> to vector<8x128xf32>
    %cst_17 = arith.constant 5.000000e-01 : f32
    %18 = vector.broadcast %cst_17 : f32 to vector<8x128xf32>
    %19 = arith.mulf %18, %17 : vector<8x128xf32>
    %cst_18 = arith.constant 5.000000e-01 : f32
    %20 = vector.broadcast %cst_18 : f32 to vector<8x128xf32>
    %21 = arith.addf %19, %20 : vector<8x128xf32>
    %22 = vector.extract_strided_slice %16 {offsets = [0, 128], sizes = [8, 128], strides = [1, 1]} : vector<8x512xf32> to vector<8x128xf32>
    %cst_19 = arith.constant 5.000000e-01 : f32
    %23 = vector.broadcast %cst_19 : f32 to vector<8x128xf32>
    %24 = arith.mulf %23, %22 : vector<8x128xf32>
    %cst_20 = arith.constant 5.000000e-01 : f32
    %25 = vector.broadcast %cst_20 : f32 to vector<8x128xf32>
    %26 = arith.addf %24, %25 : vector<8x128xf32>
    %27 = vector.extract_strided_slice %16 {offsets = [0, 256], sizes = [8, 128], strides = [1, 1]} : vector<8x512xf32> to vector<8x128xf32>
    %28 = vector.extract_strided_slice %16 {offsets = [0, 384], sizes = [8, 128], strides = [1, 1]} : vector<8x512xf32> to vector<8x128xf32>
    %cst_21 = arith.constant 5.000000e-01 : f32
    %29 = vector.broadcast %cst_21 : f32 to vector<8x128xf32>
    %30 = arith.mulf %29, %28 : vector<8x128xf32>
    %cst_22 = arith.constant 5.000000e-01 : f32
    %31 = vector.broadcast %cst_22 : f32 to vector<8x128xf32>
    %32 = arith.addf %30, %31 : vector<8x128xf32>
    %33 = arith.mulf %26, %8 : vector<8x128xf32>
    %34 = arith.mulf %21, %27 : vector<8x128xf32>
    %35 = arith.addf %33, %34 : vector<8x128xf32>
    %36 = math.tanh %35 : vector<8x128xf32>
    %37 = arith.mulf %32, %36 : vector<8x128xf32>
    %c8 = arith.constant 8 : index
    %c0_23 = arith.constant 0 : index
    %38 = vector.load %arg11[%c8, %c0_23] : memref<64x512xf32, #tpu.memory_space<vmem>>, vector<8x512xf32>
    %39 = arith.truncf %37 : vector<8x128xf32> to vector<8x128xbf16>
    %c0_24 = arith.constant 0 : index
    %c0_25 = arith.constant 0 : index
    %40 = vector.load %arg4[%c0_24, %c0_25] : memref<128x512xbf16, #tpu.memory_space<vmem>>, vector<128x512xbf16>
    %cst_26 = arith.constant dense<0.000000e+00> : vector<8x512xf32>
    %41 = tpu.matmul %39, %40, %cst_26 {dimension_numbers = #tpu.dot_dimension_numbers<[1], [0], [0], [1], [0, 0, 1, 1], [], []>} : vector<8x128xbf16>, vector<128x512xbf16>, vector<8x512xf32> -> vector<8x512xf32>
    %42 = arith.addf %38, %41 : vector<8x512xf32>
    %cst_27 = arith.constant 5.000000e-01 : f32
    %43 = vector.broadcast %cst_27 : f32 to vector<8x512xf32>
    %44 = arith.mulf %43, %42 : vector<8x512xf32>
    %45 = math.tanh %44 : vector<8x512xf32>
    %46 = vector.extract_strided_slice %45 {offsets = [0, 0], sizes = [8, 128], strides = [1, 1]} : vector<8x512xf32> to vector<8x128xf32>
    %cst_28 = arith.constant 5.000000e-01 : f32
    %47 = vector.broadcast %cst_28 : f32 to vector<8x128xf32>
    %48 = arith.mulf %47, %46 : vector<8x128xf32>
    %cst_29 = arith.constant 5.000000e-01 : f32
    %49 = vector.broadcast %cst_29 : f32 to vector<8x128xf32>
    %50 = arith.addf %48, %49 : vector<8x128xf32>
    %51 = vector.extract_strided_slice %45 {offsets = [0, 128], sizes = [8, 128], strides = [1, 1]} : vector<8x512xf32> to vector<8x128xf32>
    %cst_30 = arith.constant 5.000000e-01 : f32
    %52 = vector.broadcast %cst_30 : f32 to vector<8x128xf32>
    %53 = arith.mulf %52, %51 : vector<8x128xf32>
    %cst_31 = arith.constant 5.000000e-01 : f32
    %54 = vector.broadcast %cst_31 : f32 to vector<8x128xf32>
    %55 = arith.addf %53, %54 : vector<8x128xf32>
    %56 = vector.extract_strided_slice %45 {offsets = [0, 256], sizes = [8, 128], strides = [1, 1]} : vector<8x512xf32> to vector<8x128xf32>
    %57 = vector.extract_strided_slice %45 {offsets = [0, 384], sizes = [8, 128], strides = [1, 1]} : vector<8x512xf32> to vector<8x128xf32>
    %cst_32 = arith.constant 5.000000e-01 : f32
    %58 = vector.broadcast %cst_32 : f32 to vector<8x128xf32>
    %59 = arith.mulf %58, %57 : vector<8x128xf32>
    %cst_33 = arith.constant 5.000000e-01 : f32
    %60 = vector.broadcast %cst_33 : f32 to vector<8x128xf32>
    %61 = arith.addf %59, %60 : vector<8x128xf32>
    %62 = arith.mulf %55, %35 : vector<8x128xf32>
    %63 = arith.mulf %50, %56 : vector<8x128xf32>
    %64 = arith.addf %62, %63 : vector<8x128xf32>
    %65 = math.tanh %64 : vector<8x128xf32>
    %66 = arith.mulf %61, %65 : vector<8x128xf32>
    %c16 = arith.constant 16 : index
    %c0_34 = arith.constant 0 : index
    %67 = vector.load %arg11[%c16, %c0_34] : memref<64x512xf32, #tpu.memory_space<vmem>>, vector<8x512xf32>
    %68 = arith.truncf %66 : vector<8x128xf32> to vector<8x128xbf16>
    %c0_35 = arith.constant 0 : index
    %c0_36 = arith.constant 0 : index
    %69 = vector.load %arg4[%c0_35, %c0_36] : memref<128x512xbf16, #tpu.memory_space<vmem>>, vector<128x512xbf16>
    %cst_37 = arith.constant dense<0.000000e+00> : vector<8x512xf32>
    %70 = tpu.matmul %68, %69, %cst_37 {dimension_numbers = #tpu.dot_dimension_numbers<[1], [0], [0], [1], [0, 0, 1, 1], [], []>} : vector<8x128xbf16>, vector<128x512xbf16>, vector<8x512xf32> -> vector<8x512xf32>
    %71 = arith.addf %67, %70 : vector<8x512xf32>
    %cst_38 = arith.constant 5.000000e-01 : f32
    %72 = vector.broadcast %cst_38 : f32 to vector<8x512xf32>
    %73 = arith.mulf %72, %71 : vector<8x512xf32>
    %74 = math.tanh %73 : vector<8x512xf32>
    %75 = vector.extract_strided_slice %74 {offsets = [0, 0], sizes = [8, 128], strides = [1, 1]} : vector<8x512xf32> to vector<8x128xf32>
    %cst_39 = arith.constant 5.000000e-01 : f32
    %76 = vector.broadcast %cst_39 : f32 to vector<8x128xf32>
    %77 = arith.mulf %76, %75 : vector<8x128xf32>
    %cst_40 = arith.constant 5.000000e-01 : f32
    %78 = vector.broadcast %cst_40 : f32 to vector<8x128xf32>
    %79 = arith.addf %77, %78 : vector<8x128xf32>
    %80 = vector.extract_strided_slice %74 {offsets = [0, 128], sizes = [8, 128], strides = [1, 1]} : vector<8x512xf32> to vector<8x128xf32>
    %cst_41 = arith.constant 5.000000e-01 : f32
    %81 = vector.broadcast %cst_41 : f32 to vector<8x128xf32>
    %82 = arith.mulf %81, %80 : vector<8x128xf32>
    %cst_42 = arith.constant 5.000000e-01 : f32
    %83 = vector.broadcast %cst_42 : f32 to vector<8x128xf32>
    %84 = arith.addf %82, %83 : vector<8x128xf32>
    %85 = vector.extract_strided_slice %74 {offsets = [0, 256], sizes = [8, 128], strides = [1, 1]} : vector<8x512xf32> to vector<8x128xf32>
    %86 = vector.extract_strided_slice %74 {offsets = [0, 384], sizes = [8, 128], strides = [1, 1]} : vector<8x512xf32> to vector<8x128xf32>
    %cst_43 = arith.constant 5.000000e-01 : f32
    %87 = vector.broadcast %cst_43 : f32 to vector<8x128xf32>
    %88 = arith.mulf %87, %86 : vector<8x128xf32>
    %cst_44 = arith.constant 5.000000e-01 : f32
    %89 = vector.broadcast %cst_44 : f32 to vector<8x128xf32>
    %90 = arith.addf %88, %89 : vector<8x128xf32>
    %91 = arith.mulf %84, %64 : vector<8x128xf32>
    %92 = arith.mulf %79, %85 : vector<8x128xf32>
    %93 = arith.addf %91, %92 : vector<8x128xf32>
    %94 = math.tanh %93 : vector<8x128xf32>
    %95 = arith.mulf %90, %94 : vector<8x128xf32>
    %c24 = arith.constant 24 : index
    %c0_45 = arith.constant 0 : index
    %96 = vector.load %arg11[%c24, %c0_45] : memref<64x512xf32, #tpu.memory_space<vmem>>, vector<8x512xf32>
    %97 = arith.truncf %95 : vector<8x128xf32> to vector<8x128xbf16>
    %c0_46 = arith.constant 0 : index
    %c0_47 = arith.constant 0 : index
    %98 = vector.load %arg4[%c0_46, %c0_47] : memref<128x512xbf16, #tpu.memory_space<vmem>>, vector<128x512xbf16>
    %cst_48 = arith.constant dense<0.000000e+00> : vector<8x512xf32>
    %99 = tpu.matmul %97, %98, %cst_48 {dimension_numbers = #tpu.dot_dimension_numbers<[1], [0], [0], [1], [0, 0, 1, 1], [], []>} : vector<8x128xbf16>, vector<128x512xbf16>, vector<8x512xf32> -> vector<8x512xf32>
    %100 = arith.addf %96, %99 : vector<8x512xf32>
    %cst_49 = arith.constant 5.000000e-01 : f32
    %101 = vector.broadcast %cst_49 : f32 to vector<8x512xf32>
    %102 = arith.mulf %101, %100 : vector<8x512xf32>
    %103 = math.tanh %102 : vector<8x512xf32>
    %104 = vector.extract_strided_slice %103 {offsets = [0, 0], sizes = [8, 128], strides = [1, 1]} : vector<8x512xf32> to vector<8x128xf32>
    %cst_50 = arith.constant 5.000000e-01 : f32
    %105 = vector.broadcast %cst_50 : f32 to vector<8x128xf32>
    %106 = arith.mulf %105, %104 : vector<8x128xf32>
    %cst_51 = arith.constant 5.000000e-01 : f32
    %107 = vector.broadcast %cst_51 : f32 to vector<8x128xf32>
    %108 = arith.addf %106, %107 : vector<8x128xf32>
    %109 = vector.extract_strided_slice %103 {offsets = [0, 128], sizes = [8, 128], strides = [1, 1]} : vector<8x512xf32> to vector<8x128xf32>
    %cst_52 = arith.constant 5.000000e-01 : f32
    %110 = vector.broadcast %cst_52 : f32 to vector<8x128xf32>
    %111 = arith.mulf %110, %109 : vector<8x128xf32>
    %cst_53 = arith.constant 5.000000e-01 : f32
    %112 = vector.broadcast %cst_53 : f32 to vector<8x128xf32>
    %113 = arith.addf %111, %112 : vector<8x128xf32>
    %114 = vector.extract_strided_slice %103 {offsets = [0, 256], sizes = [8, 128], strides = [1, 1]} : vector<8x512xf32> to vector<8x128xf32>
    %115 = vector.extract_strided_slice %103 {offsets = [0, 384], sizes = [8, 128], strides = [1, 1]} : vector<8x512xf32> to vector<8x128xf32>
    %cst_54 = arith.constant 5.000000e-01 : f32
    %116 = vector.broadcast %cst_54 : f32 to vector<8x128xf32>
    %117 = arith.mulf %116, %115 : vector<8x128xf32>
    %cst_55 = arith.constant 5.000000e-01 : f32
    %118 = vector.broadcast %cst_55 : f32 to vector<8x128xf32>
    %119 = arith.addf %117, %118 : vector<8x128xf32>
    %120 = arith.mulf %113, %93 : vector<8x128xf32>
    %121 = arith.mulf %108, %114 : vector<8x128xf32>
    %122 = arith.addf %120, %121 : vector<8x128xf32>
    %123 = math.tanh %122 : vector<8x128xf32>
    %124 = arith.mulf %119, %123 : vector<8x128xf32>
    %c32 = arith.constant 32 : index
    %c0_56 = arith.constant 0 : index
    %125 = vector.load %arg11[%c32, %c0_56] : memref<64x512xf32, #tpu.memory_space<vmem>>, vector<8x512xf32>
    %126 = arith.truncf %124 : vector<8x128xf32> to vector<8x128xbf16>
    %c0_57 = arith.constant 0 : index
    %c0_58 = arith.constant 0 : index
    %127 = vector.load %arg4[%c0_57, %c0_58] : memref<128x512xbf16, #tpu.memory_space<vmem>>, vector<128x512xbf16>
    %cst_59 = arith.constant dense<0.000000e+00> : vector<8x512xf32>
    %128 = tpu.matmul %126, %127, %cst_59 {dimension_numbers = #tpu.dot_dimension_numbers<[1], [0], [0], [1], [0, 0, 1, 1], [], []>} : vector<8x128xbf16>, vector<128x512xbf16>, vector<8x512xf32> -> vector<8x512xf32>
    %129 = arith.addf %125, %128 : vector<8x512xf32>
    %cst_60 = arith.constant 5.000000e-01 : f32
    %130 = vector.broadcast %cst_60 : f32 to vector<8x512xf32>
    %131 = arith.mulf %130, %129 : vector<8x512xf32>
    %132 = math.tanh %131 : vector<8x512xf32>
    %133 = vector.extract_strided_slice %132 {offsets = [0, 0], sizes = [8, 128], strides = [1, 1]} : vector<8x512xf32> to vector<8x128xf32>
    %cst_61 = arith.constant 5.000000e-01 : f32
    %134 = vector.broadcast %cst_61 : f32 to vector<8x128xf32>
    %135 = arith.mulf %134, %133 : vector<8x128xf32>
    %cst_62 = arith.constant 5.000000e-01 : f32
    %136 = vector.broadcast %cst_62 : f32 to vector<8x128xf32>
    %137 = arith.addf %135, %136 : vector<8x128xf32>
    %138 = vector.extract_strided_slice %132 {offsets = [0, 128], sizes = [8, 128], strides = [1, 1]} : vector<8x512xf32> to vector<8x128xf32>
    %cst_63 = arith.constant 5.000000e-01 : f32
    %139 = vector.broadcast %cst_63 : f32 to vector<8x128xf32>
    %140 = arith.mulf %139, %138 : vector<8x128xf32>
    %cst_64 = arith.constant 5.000000e-01 : f32
    %141 = vector.broadcast %cst_64 : f32 to vector<8x128xf32>
    %142 = arith.addf %140, %141 : vector<8x128xf32>
    %143 = vector.extract_strided_slice %132 {offsets = [0, 256], sizes = [8, 128], strides = [1, 1]} : vector<8x512xf32> to vector<8x128xf32>
    %144 = vector.extract_strided_slice %132 {offsets = [0, 384], sizes = [8, 128], strides = [1, 1]} : vector<8x512xf32> to vector<8x128xf32>
    %cst_65 = arith.constant 5.000000e-01 : f32
    %145 = vector.broadcast %cst_65 : f32 to vector<8x128xf32>
    %146 = arith.mulf %145, %144 : vector<8x128xf32>
    %cst_66 = arith.constant 5.000000e-01 : f32
    %147 = vector.broadcast %cst_66 : f32 to vector<8x128xf32>
    %148 = arith.addf %146, %147 : vector<8x128xf32>
    %149 = arith.mulf %142, %122 : vector<8x128xf32>
    %150 = arith.mulf %137, %143 : vector<8x128xf32>
    %151 = arith.addf %149, %150 : vector<8x128xf32>
    %152 = math.tanh %151 : vector<8x128xf32>
    %153 = arith.mulf %148, %152 : vector<8x128xf32>
    %c40 = arith.constant 40 : index
    %c0_67 = arith.constant 0 : index
    %154 = vector.load %arg11[%c40, %c0_67] : memref<64x512xf32, #tpu.memory_space<vmem>>, vector<8x512xf32>
    %155 = arith.truncf %153 : vector<8x128xf32> to vector<8x128xbf16>
    %c0_68 = arith.constant 0 : index
    %c0_69 = arith.constant 0 : index
    %156 = vector.load %arg4[%c0_68, %c0_69] : memref<128x512xbf16, #tpu.memory_space<vmem>>, vector<128x512xbf16>
    %cst_70 = arith.constant dense<0.000000e+00> : vector<8x512xf32>
    %157 = tpu.matmul %155, %156, %cst_70 {dimension_numbers = #tpu.dot_dimension_numbers<[1], [0], [0], [1], [0, 0, 1, 1], [], []>} : vector<8x128xbf16>, vector<128x512xbf16>, vector<8x512xf32> -> vector<8x512xf32>
    %158 = arith.addf %154, %157 : vector<8x512xf32>
    %cst_71 = arith.constant 5.000000e-01 : f32
    %159 = vector.broadcast %cst_71 : f32 to vector<8x512xf32>
    %160 = arith.mulf %159, %158 : vector<8x512xf32>
    %161 = math.tanh %160 : vector<8x512xf32>
    %162 = vector.extract_strided_slice %161 {offsets = [0, 0], sizes = [8, 128], strides = [1, 1]} : vector<8x512xf32> to vector<8x128xf32>
    %cst_72 = arith.constant 5.000000e-01 : f32
    %163 = vector.broadcast %cst_72 : f32 to vector<8x128xf32>
    %164 = arith.mulf %163, %162 : vector<8x128xf32>
    %cst_73 = arith.constant 5.000000e-01 : f32
    %165 = vector.broadcast %cst_73 : f32 to vector<8x128xf32>
    %166 = arith.addf %164, %165 : vector<8x128xf32>
    %167 = vector.extract_strided_slice %161 {offsets = [0, 128], sizes = [8, 128], strides = [1, 1]} : vector<8x512xf32> to vector<8x128xf32>
    %cst_74 = arith.constant 5.000000e-01 : f32
    %168 = vector.broadcast %cst_74 : f32 to vector<8x128xf32>
    %169 = arith.mulf %168, %167 : vector<8x128xf32>
    %cst_75 = arith.constant 5.000000e-01 : f32
    %170 = vector.broadcast %cst_75 : f32 to vector<8x128xf32>
    %171 = arith.addf %169, %170 : vector<8x128xf32>
    %172 = vector.extract_strided_slice %161 {offsets = [0, 256], sizes = [8, 128], strides = [1, 1]} : vector<8x512xf32> to vector<8x128xf32>
    %173 = vector.extract_strided_slice %161 {offsets = [0, 384], sizes = [8, 128], strides = [1, 1]} : vector<8x512xf32> to vector<8x128xf32>
    %cst_76 = arith.constant 5.000000e-01 : f32
    %174 = vector.broadcast %cst_76 : f32 to vector<8x128xf32>
    %175 = arith.mulf %174, %173 : vector<8x128xf32>
    %cst_77 = arith.constant 5.000000e-01 : f32
    %176 = vector.broadcast %cst_77 : f32 to vector<8x128xf32>
    %177 = arith.addf %175, %176 : vector<8x128xf32>
    %178 = arith.mulf %171, %151 : vector<8x128xf32>
    %179 = arith.mulf %166, %172 : vector<8x128xf32>
    %180 = arith.addf %178, %179 : vector<8x128xf32>
    %181 = math.tanh %180 : vector<8x128xf32>
    %182 = arith.mulf %177, %181 : vector<8x128xf32>
    %c48 = arith.constant 48 : index
    %c0_78 = arith.constant 0 : index
    %183 = vector.load %arg11[%c48, %c0_78] : memref<64x512xf32, #tpu.memory_space<vmem>>, vector<8x512xf32>
    %184 = arith.truncf %182 : vector<8x128xf32> to vector<8x128xbf16>
    %c0_79 = arith.constant 0 : index
    %c0_80 = arith.constant 0 : index
    %185 = vector.load %arg4[%c0_79, %c0_80] : memref<128x512xbf16, #tpu.memory_space<vmem>>, vector<128x512xbf16>
    %cst_81 = arith.constant dense<0.000000e+00> : vector<8x512xf32>
    %186 = tpu.matmul %184, %185, %cst_81 {dimension_numbers = #tpu.dot_dimension_numbers<[1], [0], [0], [1], [0, 0, 1, 1], [], []>} : vector<8x128xbf16>, vector<128x512xbf16>, vector<8x512xf32> -> vector<8x512xf32>
    %187 = arith.addf %183, %186 : vector<8x512xf32>
    %cst_82 = arith.constant 5.000000e-01 : f32
    %188 = vector.broadcast %cst_82 : f32 to vector<8x512xf32>
    %189 = arith.mulf %188, %187 : vector<8x512xf32>
    %190 = math.tanh %189 : vector<8x512xf32>
    %191 = vector.extract_strided_slice %190 {offsets = [0, 0], sizes = [8, 128], strides = [1, 1]} : vector<8x512xf32> to vector<8x128xf32>
    %cst_83 = arith.constant 5.000000e-01 : f32
    %192 = vector.broadcast %cst_83 : f32 to vector<8x128xf32>
    %193 = arith.mulf %192, %191 : vector<8x128xf32>
    %cst_84 = arith.constant 5.000000e-01 : f32
    %194 = vector.broadcast %cst_84 : f32 to vector<8x128xf32>
    %195 = arith.addf %193, %194 : vector<8x128xf32>
    %196 = vector.extract_strided_slice %190 {offsets = [0, 128], sizes = [8, 128], strides = [1, 1]} : vector<8x512xf32> to vector<8x128xf32>
    %cst_85 = arith.constant 5.000000e-01 : f32
    %197 = vector.broadcast %cst_85 : f32 to vector<8x128xf32>
    %198 = arith.mulf %197, %196 : vector<8x128xf32>
    %cst_86 = arith.constant 5.000000e-01 : f32
    %199 = vector.broadcast %cst_86 : f32 to vector<8x128xf32>
    %200 = arith.addf %198, %199 : vector<8x128xf32>
    %201 = vector.extract_strided_slice %190 {offsets = [0, 256], sizes = [8, 128], strides = [1, 1]} : vector<8x512xf32> to vector<8x128xf32>
    %202 = vector.extract_strided_slice %190 {offsets = [0, 384], sizes = [8, 128], strides = [1, 1]} : vector<8x512xf32> to vector<8x128xf32>
    %cst_87 = arith.constant 5.000000e-01 : f32
    %203 = vector.broadcast %cst_87 : f32 to vector<8x128xf32>
    %204 = arith.mulf %203, %202 : vector<8x128xf32>
    %cst_88 = arith.constant 5.000000e-01 : f32
    %205 = vector.broadcast %cst_88 : f32 to vector<8x128xf32>
    %206 = arith.addf %204, %205 : vector<8x128xf32>
    %207 = arith.mulf %200, %180 : vector<8x128xf32>
    %208 = arith.mulf %195, %201 : vector<8x128xf32>
    %209 = arith.addf %207, %208 : vector<8x128xf32>
    %210 = math.tanh %209 : vector<8x128xf32>
    %211 = arith.mulf %206, %210 : vector<8x128xf32>
    %c56 = arith.constant 56 : index
    %c0_89 = arith.constant 0 : index
    %212 = vector.load %arg11[%c56, %c0_89] : memref<64x512xf32, #tpu.memory_space<vmem>>, vector<8x512xf32>
    %213 = arith.truncf %211 : vector<8x128xf32> to vector<8x128xbf16>
    %c0_90 = arith.constant 0 : index
    %c0_91 = arith.constant 0 : index
    %214 = vector.load %arg4[%c0_90, %c0_91] : memref<128x512xbf16, #tpu.memory_space<vmem>>, vector<128x512xbf16>
    %cst_92 = arith.constant dense<0.000000e+00> : vector<8x512xf32>
    %215 = tpu.matmul %213, %214, %cst_92 {dimension_numbers = #tpu.dot_dimension_numbers<[1], [0], [0], [1], [0, 0, 1, 1], [], []>} : vector<8x128xbf16>, vector<128x512xbf16>, vector<8x512xf32> -> vector<8x512xf32>
    %216 = arith.addf %212, %215 : vector<8x512xf32>
    %cst_93 = arith.constant 5.000000e-01 : f32
    %217 = vector.broadcast %cst_93 : f32 to vector<8x512xf32>
    %218 = arith.mulf %217, %216 : vector<8x512xf32>
    %219 = math.tanh %218 : vector<8x512xf32>
    %220 = vector.extract_strided_slice %219 {offsets = [0, 0], sizes = [8, 128], strides = [1, 1]} : vector<8x512xf32> to vector<8x128xf32>
    %cst_94 = arith.constant 5.000000e-01 : f32
    %221 = vector.broadcast %cst_94 : f32 to vector<8x128xf32>
    %222 = arith.mulf %221, %220 : vector<8x128xf32>
    %cst_95 = arith.constant 5.000000e-01 : f32
    %223 = vector.broadcast %cst_95 : f32 to vector<8x128xf32>
    %224 = arith.addf %222, %223 : vector<8x128xf32>
    %225 = vector.extract_strided_slice %219 {offsets = [0, 128], sizes = [8, 128], strides = [1, 1]} : vector<8x512xf32> to vector<8x128xf32>
    %cst_96 = arith.constant 5.000000e-01 : f32
    %226 = vector.broadcast %cst_96 : f32 to vector<8x128xf32>
    %227 = arith.mulf %226, %225 : vector<8x128xf32>
    %cst_97 = arith.constant 5.000000e-01 : f32
    %228 = vector.broadcast %cst_97 : f32 to vector<8x128xf32>
    %229 = arith.addf %227, %228 : vector<8x128xf32>
    %230 = vector.extract_strided_slice %219 {offsets = [0, 256], sizes = [8, 128], strides = [1, 1]} : vector<8x512xf32> to vector<8x128xf32>
    %231 = vector.extract_strided_slice %219 {offsets = [0, 384], sizes = [8, 128], strides = [1, 1]} : vector<8x512xf32> to vector<8x128xf32>
    %cst_98 = arith.constant 5.000000e-01 : f32
    %232 = vector.broadcast %cst_98 : f32 to vector<8x128xf32>
    %233 = arith.mulf %232, %231 : vector<8x128xf32>
    %cst_99 = arith.constant 5.000000e-01 : f32
    %234 = vector.broadcast %cst_99 : f32 to vector<8x128xf32>
    %235 = arith.addf %233, %234 : vector<8x128xf32>
    %236 = arith.mulf %229, %209 : vector<8x128xf32>
    %237 = arith.mulf %224, %230 : vector<8x128xf32>
    %238 = arith.addf %236, %237 : vector<8x128xf32>
    %239 = math.tanh %238 : vector<8x128xf32>
    %240 = arith.mulf %235, %239 : vector<8x128xf32>
    %241 = arith.truncf %240 : vector<8x128xf32> to vector<8x128xbf16>
    %c0_100 = arith.constant 0 : index
    %c0_101 = arith.constant 0 : index
    %242 = vector.load %arg6[%c0_100, %c0_101] : memref<128x128xbf16, #tpu.memory_space<vmem>>, vector<128x128xbf16>
    %cst_102 = arith.constant dense<0.000000e+00> : vector<8x128xf32>
    %243 = tpu.matmul %241, %242, %cst_102 {dimension_numbers = #tpu.dot_dimension_numbers<[1], [0], [0], [1], [0, 0, 1, 1], [], []>} : vector<8x128xbf16>, vector<128x128xbf16>, vector<8x128xf32> -> vector<8x128xf32>
    %c0_103 = arith.constant 0 : index
    %c0_104 = arith.constant 0 : index
    %244 = vector.load %arg7[%c0_103, %c0_104] : memref<1x128xf32, #tpu.memory_space<vmem>>, vector<1x128xf32>
    %245 = vector.broadcast %244 : vector<1x128xf32> to vector<8x128xf32>
    %246 = arith.addf %243, %245 : vector<8x128xf32>
    %c0_105 = arith.constant 0 : index
    %c0_106 = arith.constant 0 : index
    %247 = vector.load %arg8[%c0_105, %c0_106] : memref<8x128xf32, #tpu.memory_space<vmem>>, vector<8x128xf32>
    tpu.vector_store %arg8[%c0_105, %c0_106], %246 {strides = array<i32>} : memref<8x128xf32, #tpu.memory_space<vmem>>, vector<8x128xf32>,
    %c0_107 = arith.constant 0 : index
    %c0_108 = arith.constant 0 : index
    %248 = vector.load %arg9[%c0_107, %c0_108] : memref<8x128xf32, #tpu.memory_space<vmem>>, vector<8x128xf32>
    tpu.vector_store %arg9[%c0_107, %c0_108], %240 {strides = array<i32>} : memref<8x128xf32, #tpu.memory_space<vmem>>, vector<8x128xf32>,
    %c0_109 = arith.constant 0 : index
    %c0_110 = arith.constant 0 : index
    %249 = vector.load %arg10[%c0_109, %c0_110] : memref<8x128xf32, #tpu.memory_space<vmem>>, vector<8x128xf32>
    tpu.vector_store %arg10[%c0_109, %c0_110], %238 {strides = array<i32>} : memref<8x128xf32, #tpu.memory_space<vmem>>, vector<8x128xf32>,
    return
  }
}

</mosaic_0001>

<llo_original>
// kernel: tpu_custom_call.1
$region0: #{tpu_custom_call.1}
  #allocation0 [shape = 'u32[]', space=smem, size = 0x4, offset = 0x4, fixed_abs, tag = 'smem constant byte address 0x4 - core index']
  #allocation1 [shape = 'u32[72,128]{1,0:T(1,128)}', space=vmem, size = 0x9000, scoped, tag = 'internal scratch']
  #allocation2 [shape = 'f32[64,512]{1,0:T(8,128)}', space=vmem, size = 0x20000, scoped, tag = 'scratch operand']
  %s0 = inlined_call_operand.vmem [shape: bf16[64,4], index: 0, kind: input, shape index: {}]
  %s1 = inlined_call_operand.vmem [shape: f32[8,128], index: 1, kind: input, shape index: {}]
  %s2 = inlined_call_operand.vmem [shape: f32[8,128], index: 2, kind: input, shape index: {}]
  %s3 = inlined_call_operand.vmem [shape: bf16[4,512], index: 3, kind: input, shape index: {}]
  %s4 = inlined_call_operand.hbm [shape: bf16[128,512], index: 4, kind: input, shape index: {}]
  %s5 = inlined_call_operand.vmem [shape: f32[1,512], index: 5, kind: input, shape index: {}]
  %s6 = inlined_call_operand.hbm [shape: bf16[128,128], index: 6, kind: input, shape index: {}]
  %s7 = inlined_call_operand.vmem [shape: f32[1,128], index: 7, kind: input, shape index: {}]
  %s8 = inlined_call_operand.hbm [shape: f32[8,128], index: 8, kind: output, shape index: {0}]
  %s9 = inlined_call_operand.hbm [shape: f32[8,128], index: 9, kind: output, shape index: {1}]
  %s10 = inlined_call_operand.hbm [shape: f32[8,128], index: 10, kind: output, shape index: {2}]
  %11 = xla_tuple %s8, %s9, %s10
  %s12 = sld [smem:[#allocation0]]
  $region66: #{tpu_custom_call.1} parent=0
    _
  %s14 = ssub.s32 1, %s12
  %s15 = scalar_select 0, %s14, %s12
  $region1: #{tpu_custom_call.1} parent=0
    #allocation3 [shape = 'u8[131072]{0}', space=vmem, size = 0x20000, scoped, tag = 'input window, operand 4, single buffered']
    #allocation4 [shape = 's32[1]{0}', space=sflag, size = 0x4, scoped, tag = 'scoped memory for tpu_custom_call.1']
    #allocation5 [shape = 's32[1]{0}', space=sflag, size = 0x4, scoped, tag = 'scoped memory for tpu_custom_call.1']
    #allocation6 [shape = 'u8[32768]{0}', space=vmem, size = 0x8000, scoped, tag = 'input window, operand 6, single buffered']
    #allocation7 [shape = 's32[1]{0}', space=sflag, size = 0x4, scoped, tag = 'scoped memory for tpu_custom_call.1']
    #allocation8 [shape = 'u8[4096]{0}', space=vmem, size = 0x1000, scoped, tag = 'output window, operand 0, single buffered']
    #allocation9 [shape = 'u8[4096]{0}', space=vmem, size = 0x1000, scoped, tag = 'output window, operand 1, single buffered']
    #allocation10 [shape = 's32[1]{0}', space=sflag, size = 0x4, scoped, tag = 'scoped memory for tpu_custom_call.1']
    #allocation11 [shape = 'u8[4096]{0}', space=vmem, size = 0x1000, scoped, tag = 'output window, operand 2, single buffered']
    %16 = vsyncpa [#allocation4], 0
    %17 = vsyncpa [#allocation7], 0
    %18 = vsyncpa [#allocation5], 0
    %19 = vsyncpa [#allocation10], 0
    // Predicated region
    $region2: #{tpu_custom_call.1} parent=1 // pred_check
      _
    $region3: #{tpu_custom_call.1} parent=1 // pred_check_branch
      %21 = sbr.rel (0) target = $region5
    $region4: #{tpu_custom_call.1} parent=1 // pred_region
      _
    $region5: #{tpu_custom_call.1} parent=1 // pred_fallthru
      _
    // Predicated region
    $region6: #{tpu_custom_call.1} parent=1 // pred_check
      _
    $region7: #{tpu_custom_call.1} parent=1 // pred_check_branch
      %23 = sbr.rel (0) target = $region9
    $region8: #{tpu_custom_call.1} parent=1 // pred_region
      _
    $region9: #{tpu_custom_call.1} parent=1 // pred_fallthru
      _
    // Predicated region
    $region10: #{tpu_custom_call.1} parent=1 // pred_check
      _
    $region11: #{tpu_custom_call.1} parent=1 // pred_check_branch
      %25 = sbr.rel (0) target = $region13
    $region12: #{tpu_custom_call.1} parent=1 // pred_region
      _
    $region13: #{tpu_custom_call.1} parent=1 // pred_fallthru
      _
    // Predicated region
    $region14: #{tpu_custom_call.1} parent=1 // pred_check
      _
    $region15: #{tpu_custom_call.1} parent=1 // pred_check_branch
      %27 = sbr.rel (0) target = $region17
    $region16: #{tpu_custom_call.1} parent=1 // pred_region
      _
    $region17: #{tpu_custom_call.1} parent=1 // pred_fallthru
      _
    // Predicated region
    $region18: #{tpu_custom_call.1} parent=1 // pred_check
      _
    $region19: #{tpu_custom_call.1} parent=1 // pred_check_branch
      %29 = sbr.rel (0) target = $region21
    $region20: #{tpu_custom_call.1} parent=1 // pred_region
      %31 = vsyncadd [#allocation4], 0
      %s32 = sshll.u32 %s4, 4
      %s33 = int_to_ptr.hbm [resolvable:$true] %s32
      %s34 = sshll.u32 [#allocation3], 4
      %s35 = int_to_ptr.vmem [resolvable:$true] %s34
      %40 = dma.hbm_to_vmem [thread:$0]  %s33, 4096, %s35, [#allocation4], 256, 256, 16
    $region21: #{tpu_custom_call.1} parent=1 // pred_fallthru
      _
    // Predicated region
    $region22: #{tpu_custom_call.1} parent=1 // pred_check
      _
    $region23: #{tpu_custom_call.1} parent=1 // pred_check_branch
      %42 = sbr.rel (0) target = $region25
    $region24: #{tpu_custom_call.1} parent=1 // pred_region
      _
    $region25: #{tpu_custom_call.1} parent=1 // pred_fallthru
      _
    // Predicated region
    $region26: #{tpu_custom_call.1} parent=1 // pred_check
      _
    $region27: #{tpu_custom_call.1} parent=1 // pred_check_branch
      %44 = sbr.rel (0) target = $region29
    $region28: #{tpu_custom_call.1} parent=1 // pred_region
      %46 = vsyncadd [#allocation7], 0
      %s47 = sshll.u32 %s6, 4
      %s48 = int_to_ptr.hbm [resolvable:$true] %s47
      %s49 = sshll.u32 [#allocation6], 4
      %s50 = int_to_ptr.vmem [resolvable:$true] %s49
      %55 = dma.hbm_to_vmem [thread:$0]  %s48, 1024, %s50, [#allocation7], 64, 64, 4
    $region29: #{tpu_custom_call.1} parent=1 // pred_fallthru
      _
    // Predicated region
    $region30: #{tpu_custom_call.1} parent=1 // pred_check
      _
    $region31: #{tpu_custom_call.1} parent=1 // pred_check_branch
      %57 = sbr.rel (0) target = $region33
    $region32: #{tpu_custom_call.1} parent=1 // pred_region
      _
    $region33: #{tpu_custom_call.1} parent=1 // pred_fallthru
      _
    // Predicated region
    $region34: #{tpu_custom_call.1} parent=1 // pred_check
      _
    $region35: #{tpu_custom_call.1} parent=1 // pred_check_branch
      %59 = sbr.rel (0) target = $region37
    $region36: #{tpu_custom_call.1} parent=1 // pred_region
      %61 = dma.done [#allocation4], 4096
    $region37: #{tpu_custom_call.1} parent=1 // pred_fallthru
      _
    // Predicated region
    $region38: #{tpu_custom_call.1} parent=1 // pred_check
      _
    $region39: #{tpu_custom_call.1} parent=1 // pred_check_branch
      %63 = sbr.rel (0) target = $region41
    $region40: #{tpu_custom_call.1} parent=1 // pred_region
      %65 = dma.done [#allocation7], 1024
    $region41: #{tpu_custom_call.1} parent=1 // pred_fallthru
      _
    %v67 = vld [vmem:[%s0] sm:$0xf]
    %v68 = vld [vmem:[%s0 + $0x4] sm:$0xf]
    %v69 = vld [vmem:[%s0 + $0x8] sm:$0xf]
    %v70 = vld [vmem:[%s0 + $0xc] sm:$0xf]
    %v71 = vld [vmem:[%s0 + $0x10] sm:$0xf]
    %v72 = vld [vmem:[%s0 + $0x14] sm:$0xf]
    %v73 = vld [vmem:[%s0 + $0x18] sm:$0xf]
    %v74 = vld [vmem:[%s0 + $0x1c] sm:$0xf]
    %v75 = vld [vmem:[%s3] sm:$0xff]
    %v76 = vld [vmem:[%s5] sm:$0xf]
    %v78 = vperm.slane %v76, 0
    %v79 = vperm.slane %v76, 1
    %v80 = vperm.slane %v76, 2
    %v81 = vperm.slane %v76, 3
    %v94 = vunpack.c.l.b16 %v67
    %v95 = vunpack.c.l.b16 %v68
    %v96 = vunpack.c.l.b16 %v69
    %v97 = vunpack.c.l.b16 %v70
    %v98 = vunpack.c.l.b16 %v71
    %v99 = vunpack.c.l.b16 %v72
    %v100 = vunpack.c.l.b16 %v73
    %v101 = vunpack.c.l.b16 %v74
    %v102 = vpack.c.b16 %v95, %v94
    %v103 = vpack.c.b16 %v97, %v96
    %v104 = vpack.c.b16 %v99, %v98
    %v105 = vpack.c.b16 %v101, %v100
    %107 = vst [vmem:[#allocation1] ss:$4 sm:$0xff] %v75
    %v108 = vld.sshfl [vmem:[#allocation1] sm:$0xff pattern:$0x73625140]
    %v109 = vld.sshfl [vmem:[#allocation1 + $0x8] sm:$0xff pattern:$0x73625140]
    %v110 = vld.sshfl [vmem:[#allocation1 + $0x10] sm:$0xff pattern:$0x73625140]
    %v111 = vld.sshfl [vmem:[#allocation1 + $0x18] sm:$0xff pattern:$0x73625140]
    %vm112 = vcmask 31744
    %v114 = vsel %vm112, %v102, 0
    %v117 = vsel %vm112, %v103, 0
    %v120 = vsel %vm112, %v104, 0
    %v123 = vsel %vm112, %v105, 0
    %vm125 = vcmask 1041408
    %v126 = vsel %vm125, %v108, 0
    %v128 = vsel %vm125, %v109, 0
    %v130 = vsel %vm125, %v110, 0
    %v132 = vsel %vm125, %v111, 0
    %134 = vmatpush.bf16.msra.mxu0 0
    %135 = vmatpush.bf16.msra.mxu0 0
    %136 = vmatpush.bf16.msra.mxu0 0
    %137 = vmatpush.bf16.msra.mxu0 0
    %138 = vmatpush.bf16.msra.mxu0 0
    %139 = vmatpush.bf16.msra.mxu0 0
    %140 = vmatpush.bf16.msra.mxu0 0
    %141 = vmatpush.bf16.msra.mxu0 %v126
    %142 = vmatmul.bf16.gmra.mxu0 %v114
    %v143 = vpop.f32.mrf.mxu0
    %v144 = vadd.f32 %v78, %v143
    %v145 = vpop.f32.mrf.mxu0
    %v146 = vadd.f32 %v78, %v145
    %147 = vmatmul.bf16.gmra.mxu0 %v117
    %v148 = vpop.f32.mrf.mxu0
    %v149 = vadd.f32 %v78, %v148
    %v150 = vpop.f32.mrf.mxu0
    %v151 = vadd.f32 %v78, %v150
    %152 = vmatmul.bf16.gmra.mxu0 %v120
    %v153 = vpop.f32.mrf.mxu0
    %v154 = vadd.f32 %v78, %v153
    %v155 = vpop.f32.mrf.mxu0
    %v156 = vadd.f32 %v78, %v155
    %157 = vmatmul.bf16.gmra.mxu0 %v123
    %v158 = vpop.f32.mrf.mxu0
    %v159 = vadd.f32 %v78, %v158
    %v160 = vpop.f32.mrf.mxu0
    %v161 = vadd.f32 %v78, %v160
    %162 = vdwg.mxu0
    %163 = vmatpush.bf16.msra.mxu0 0
    %164 = vmatpush.bf16.msra.mxu0 0
    %165 = vmatpush.bf16.msra.mxu0 0
    %166 = vmatpush.bf16.msra.mxu0 0
    %167 = vmatpush.bf16.msra.mxu0 0
    %168 = vmatpush.bf16.msra.mxu0 0
    %169 = vmatpush.bf16.msra.mxu0 0
    %170 = vmatpush.bf16.msra.mxu0 %v128
    %171 = vmatmul.bf16.gmra.mxu0 %v114
    %v172 = vpop.f32.mrf.mxu0
    %v173 = vadd.f32 %v79, %v172
    %v174 = vpop.f32.mrf.mxu0
    %v175 = vadd.f32 %v79, %v174
    %176 = vmatmul.bf16.gmra.mxu0 %v117
    %v177 = vpop.f32.mrf.mxu0
    %v178 = vadd.f32 %v79, %v177
    %v179 = vpop.f32.mrf.mxu0
    %v180 = vadd.f32 %v79, %v179
    %181 = vmatmul.bf16.gmra.mxu0 %v120
    %v182 = vpop.f32.mrf.mxu0
    %v183 = vadd.f32 %v79, %v182
    %v184 = vpop.f32.mrf.mxu0
    %v185 = vadd.f32 %v79, %v184
    %186 = vmatmul.bf16.gmra.mxu0 %v123
    %v187 = vpop.f32.mrf.mxu0
    %v188 = vadd.f32 %v79, %v187
    %v189 = vpop.f32.mrf.mxu0
    %v190 = vadd.f32 %v79, %v189
    %191 = vdwg.mxu0
    %192 = vmatpush.bf16.msra.mxu0 0
    %193 = vmatpush.bf16.msra.mxu0 0
    %194 = vmatpush.bf16.msra.mxu0 0
    %195 = vmatpush.bf16.msra.mxu0 0
    %196 = vmatpush.bf16.msra.mxu0 0
    %197 = vmatpush.bf16.msra.mxu0 0
    %198 = vmatpush.bf16.msra.mxu0 0
    %199 = vmatpush.bf16.msra.mxu0 %v130
    %200 = vmatmul.bf16.gmra.mxu0 %v114
    %v201 = vpop.f32.mrf.mxu0
    %v202 = vadd.f32 %v80, %v201
    %v203 = vpop.f32.mrf.mxu0
    %v204 = vadd.f32 %v80, %v203
    %205 = vmatmul.bf16.gmra.mxu0 %v117
    %v206 = vpop.f32.mrf.mxu0
    %v207 = vadd.f32 %v80, %v206
    %v208 = vpop.f32.mrf.mxu0
    %v209 = vadd.f32 %v80, %v208
    %210 = vmatmul.bf16.gmra.mxu0 %v120
    %v211 = vpop.f32.mrf.mxu0
    %v212 = vadd.f32 %v80, %v211
    %v213 = vpop.f32.mrf.mxu0
    %v214 = vadd.f32 %v80, %v213
    %215 = vmatmul.bf16.gmra.mxu0 %v123
    %v216 = vpop.f32.mrf.mxu0
    %v217 = vadd.f32 %v80, %v216
    %v218 = vpop.f32.mrf.mxu0
    %v219 = vadd.f32 %v80, %v218
    %220 = vdwg.mxu0
    %221 = vmatpush.bf16.msra.mxu0 0
    %222 = vmatpush.bf16.msra.mxu0 0
    %223 = vmatpush.bf16.msra.mxu0 0
    %224 = vmatpush.bf16.msra.mxu0 0
    %225 = vmatpush.bf16.msra.mxu0 0
    %226 = vmatpush.bf16.msra.mxu0 0
    %227 = vmatpush.bf16.msra.mxu0 0
    %228 = vmatpush.bf16.msra.mxu0 %v132
    %229 = vmatmul.bf16.gmra.mxu0 %v114
    %v230 = vpop.f32.mrf.mxu0
    %v231 = vadd.f32 %v81, %v230
    %v232 = vpop.f32.mrf.mxu0
    %v233 = vadd.f32 %v81, %v232
    %234 = vmatmul.bf16.gmra.mxu0 %v117
    %v235 = vpop.f32.mrf.mxu0
    %v236 = vadd.f32 %v81, %v235
    %v237 = vpop.f32.mrf.mxu0
    %v238 = vadd.f32 %v81, %v237
    %239 = vmatmul.bf16.gmra.mxu0 %v120
    %v240 = vpop.f32.mrf.mxu0
    %v241 = vadd.f32 %v81, %v240
    %v242 = vpop.f32.mrf.mxu0
    %v243 = vadd.f32 %v81, %v242
    %244 = vmatmul.bf16.gmra.mxu0 %v123
    %v245 = vpop.f32.mrf.mxu0
    %v246 = vadd.f32 %v81, %v245
    %v247 = vpop.f32.mrf.mxu0
    %v248 = vadd.f32 %v81, %v247
    %249 = vdwg.mxu0
    %250 = vst [vmem:[#allocation2] sm:$0xff] %v144
    %251 = vst [vmem:[#allocation2 + $0x8] sm:$0xff] %v173
    %252 = vst [vmem:[#allocation2 + $0x10] sm:$0xff] %v202
    %253 = vst [vmem:[#allocation2 + $0x18] sm:$0xff] %v231
    %254 = vst [vmem:[#allocation2 + $0x20] sm:$0xff] %v146
    %255 = vst [vmem:[#allocation2 + $0x28] sm:$0xff] %v175
    %256 = vst [vmem:[#allocation2 + $0x30] sm:$0xff] %v204
    %257 = vst [vmem:[#allocation2 + $0x38] sm:$0xff] %v233
    %258 = vst [vmem:[#allocation2 + $0x40] sm:$0xff] %v149
    %259 = vst [vmem:[#allocation2 + $0x48] sm:$0xff] %v178
    %260 = vst [vmem:[#allocation2 + $0x50] sm:$0xff] %v207
    %261 = vst [vmem:[#allocation2 + $0x58] sm:$0xff] %v236
    %262 = vst [vmem:[#allocation2 + $0x60] sm:$0xff] %v151
    %263 = vst [vmem:[#allocation2 + $0x68] sm:$0xff] %v180
    %264 = vst [vmem:[#allocation2 + $0x70] sm:$0xff] %v209
    %265 = vst [vmem:[#allocation2 + $0x78] sm:$0xff] %v238
    %266 = vst [vmem:[#allocation2 + $0x80] sm:$0xff] %v154
    %267 = vst [vmem:[#allocation2 + $0x88] sm:$0xff] %v183
    %268 = vst [vmem:[#allocation2 + $0x90] sm:$0xff] %v212
    %269 = vst [vmem:[#allocation2 + $0x98] sm:$0xff] %v241
    %270 = vst [vmem:[#allocation2 + $0xa0] sm:$0xff] %v156
    %271 = vst [vmem:[#allocation2 + $0xa8] sm:$0xff] %v185
    %272 = vst [vmem:[#allocation2 + $0xb0] sm:$0xff] %v214
    %273 = vst [vmem:[#allocation2 + $0xb8] sm:$0xff] %v243
    %274 = vst [vmem:[#allocation2 + $0xc0] sm:$0xff] %v159
    %275 = vst [vmem:[#allocation2 + $0xc8] sm:$0xff] %v188
    %276 = vst [vmem:[#allocation2 + $0xd0] sm:$0xff] %v217
    %277 = vst [vmem:[#allocation2 + $0xd8] sm:$0xff] %v246
    %278 = vst [vmem:[#allocation2 + $0xe0] sm:$0xff] %v161
    %279 = vst [vmem:[#allocation2 + $0xe8] sm:$0xff] %v190
    %280 = vst [vmem:[#allocation2 + $0xf0] sm:$0xff] %v219
    %281 = vst [vmem:[#allocation2 + $0xf8] sm:$0xff] %v248
    %v282 = vld [vmem:[%s1] sm:$0xff]
    %v283 = vld [vmem:[%s2] sm:$0xff]
    %v284 = vld [vmem:[#allocation2] sm:$0xff]
    %v285 = vld [vmem:[#allocation2 + $0x8] sm:$0xff]
    %v286 = vld [vmem:[#allocation2 + $0x10] sm:$0xff]
    %v287 = vld [vmem:[#allocation2 + $0x18] sm:$0xff]
    %v288 = vpack.c.bf16 %v282, %v282
    %v289 = vld [vmem:[#allocation3] sm:$0xff]
    %v290 = vld [vmem:[#allocation3 + $0x8] sm:$0xff]
    %v291 = vld [vmem:[#allocation3 + $0x10] sm:$0xff]
    %v292 = vld [vmem:[#allocation3 + $0x18] sm:$0xff]
    %v293 = vld [vmem:[#allocation3 + $0x20] sm:$0xff]
    %v294 = vld [vmem:[#allocation3 + $0x28] sm:$0xff]
    %v295 = vld [vmem:[#allocation3 + $0x30] sm:$0xff]
    %v296 = vld [vmem:[#allocation3 + $0x38] sm:$0xff]
    %v297 = vld [vmem:[#allocation3 + $0x40] sm:$0xff]
    %v298 = vld [vmem:[#allocation3 + $0x48] sm:$0xff]
    %v299 = vld [vmem:[#allocation3 + $0x50] sm:$0xff]
    %v300 = vld [vmem:[#allocation3 + $0x58] sm:$0xff]
    %v301 = vld [vmem:[#allocation3 + $0x60] sm:$0xff]
    %v302 = vld [vmem:[#allocation3 + $0x68] sm:$0xff]
    %v303 = vld [vmem:[#allocation3 + $0x70] sm:$0xff]
    %v304 = vld [vmem:[#allocation3 + $0x78] sm:$0xff]
    %v305 = vld [vmem:[#allocation3 + $0x80] sm:$0xff]
    %v306 = vld [vmem:[#allocation3 + $0x88] sm:$0xff]
    %v307 = vld [vmem:[#allocation3 + $0x90] sm:$0xff]
    %v308 = vld [vmem:[#allocation3 + $0x98] sm:$0xff]
    %v309 = vld [vmem:[#allocation3 + $0xa0] sm:$0xff]
    %v310 = vld [vmem:[#allocation3 + $0xa8] sm:$0xff]
    %v311 = vld [vmem:[#allocation3 + $0xb0] sm:$0xff]
    %v312 = vld [vmem:[#allocation3 + $0xb8] sm:$0xff]
    %v313 = vld [vmem:[#allocation3 + $0xc0] sm:$0xff]
    %v314 = vld [vmem:[#allocation3 + $0xc8] sm:$0xff]
    %v315 = vld [vmem:[#allocation3 + $0xd0] sm:$0xff]
    %v316 = vld [vmem:[#allocation3 + $0xd8] sm:$0xff]
    %v317 = vld [vmem:[#allocation3 + $0xe0] sm:$0xff]
    %v318 = vld [vmem:[#allocation3 + $0xe8] sm:$0xff]
    %v319 = vld [vmem:[#allocation3 + $0xf0] sm:$0xff]
    %v320 = vld [vmem:[#allocation3 + $0xf8] sm:$0xff]
    %v353 = vunpack.c.l.b16 %v289
    %v354 = vunpack.c.h.b16 %v289
    %v355 = vunpack.c.l.b16 %v290
    %v356 = vunpack.c.h.b16 %v290
    %v357 = vunpack.c.l.b16 %v291
    %v358 = vunpack.c.h.b16 %v291
    %v359 = vunpack.c.l.b16 %v292
    %v360 = vunpack.c.h.b16 %v292
    %v361 = vunpack.c.l.b16 %v293
    %v362 = vunpack.c.h.b16 %v293
    %v363 = vunpack.c.l.b16 %v294
    %v364 = vunpack.c.h.b16 %v294
    %v365 = vunpack.c.l.b16 %v295
    %v366 = vunpack.c.h.b16 %v295
    %v367 = vunpack.c.l.b16 %v296
    %v368 = vunpack.c.h.b16 %v296
    %v369 = vunpack.c.l.b16 %v297
    %v370 = vunpack.c.h.b16 %v297
    %v371 = vunpack.c.l.b16 %v298
    %v372 = vunpack.c.h.b16 %v298
    %v373 = vunpack.c.l.b16 %v299
    %v374 = vunpack.c.h.b16 %v299
    %v375 = vunpack.c.l.b16 %v300
    %v376 = vunpack.c.h.b16 %v300
    %v377 = vunpack.c.l.b16 %v301
    %v378 = vunpack.c.h.b16 %v301
    %v379 = vunpack.c.l.b16 %v302
    %v380 = vunpack.c.h.b16 %v302
    %v381 = vunpack.c.l.b16 %v303
    %v382 = vunpack.c.h.b16 %v303
    %v383 = vunpack.c.l.b16 %v304
    %v384 = vunpack.c.h.b16 %v304
    %v385 = vunpack.c.l.b16 %v305
    %v386 = vunpack.c.h.b16 %v305
    %v387 = vunpack.c.l.b16 %v306
    %v388 = vunpack.c.h.b16 %v306
    %v389 = vunpack.c.l.b16 %v307
    %v390 = vunpack.c.h.b16 %v307
    %v391 = vunpack.c.l.b16 %v308
    %v392 = vunpack.c.h.b16 %v308
    %v393 = vunpack.c.l.b16 %v309
    %v394 = vunpack.c.h.b16 %v309
    %v395 = vunpack.c.l.b16 %v310
    %v396 = vunpack.c.h.b16 %v310
    %v397 = vunpack.c.l.b16 %v311
    %v398 = vunpack.c.h.b16 %v311
    %v399 = vunpack.c.l.b16 %v312
    %v400 = vunpack.c.h.b16 %v312
    %v401 = vunpack.c.l.b16 %v313
    %v402 = vunpack.c.h.b16 %v313
    %v403 = vunpack.c.l.b16 %v314
    %v404 = vunpack.c.h.b16 %v314
    %v405 = vunpack.c.l.b16 %v315
    %v406 = vunpack.c.h.b16 %v315
    %v407 = vunpack.c.l.b16 %v316
    %v408 = vunpack.c.h.b16 %v316
    %v409 = vunpack.c.l.b16 %v317
    %v410 = vunpack.c.h.b16 %v317
    %v411 = vunpack.c.l.b16 %v318
    %v412 = vunpack.c.h.b16 %v318
    %v413 = vunpack.c.l.b16 %v319
    %v414 = vunpack.c.h.b16 %v319
    %v415 = vunpack.c.l.b16 %v320
    %v416 = vunpack.c.h.b16 %v320
    %v417 = vpack.c.b16 %v357, %v353
    %v418 = vpack.c.b16 %v358, %v354
    %v419 = vpack.c.b16 %v359, %v355
    %v420 = vpack.c.b16 %v360, %v356
    %v421 = vpack.c.b16 %v365, %v361
    %v422 = vpack.c.b16 %v366, %v362
    %v423 = vpack.c.b16 %v367, %v363
    %v424 = vpack.c.b16 %v368, %v364
    %v425 = vpack.c.b16 %v373, %v369
    %v426 = vpack.c.b16 %v374, %v370
    %v427 = vpack.c.b16 %v375, %v371
    %v428 = vpack.c.b16 %v376, %v372
    %v429 = vpack.c.b16 %v381, %v377
    %v430 = vpack.c.b16 %v382, %v378
    %v431 = vpack.c.b16 %v383, %v379
    %v432 = vpack.c.b16 %v384, %v380
    %v433 = vpack.c.b16 %v389, %v385
    %v434 = vpack.c.b16 %v390, %v386
    %v435 = vpack.c.b16 %v391, %v387
    %v436 = vpack.c.b16 %v392, %v388
    %v437 = vpack.c.b16 %v397, %v393
    %v438 = vpack.c.b16 %v398, %v394
    %v439 = vpack.c.b16 %v399, %v395
    %v440 = vpack.c.b16 %v400, %v396
    %v441 = vpack.c.b16 %v405, %v401
    %v442 = vpack.c.b16 %v406, %v402
    %v443 = vpack.c.b16 %v407, %v403
    %v444 = vpack.c.b16 %v408, %v404
    %v445 = vpack.c.b16 %v413, %v409
    %v446 = vpack.c.b16 %v414, %v410
    %v447 = vpack.c.b16 %v415, %v411
    %v448 = vpack.c.b16 %v416, %v412
    %481 = vmatpush.bf16.msra.mxu0 %v445
    %482 = vmatpush.bf16.msra.mxu0 %v441
    %483 = vmatpush.bf16.msra.mxu0 %v437
    %484 = vmatpush.bf16.msra.mxu0 %v433
    %485 = vmatpush.bf16.msra.mxu0 %v429
    %486 = vmatpush.bf16.msra.mxu0 %v425
    %487 = vmatpush.bf16.msra.mxu0 %v421
    %488 = vmatpush.bf16.msra.mxu0 %v417
    %489 = vmatmul.bf16.gmra.mxu0 %v288
    %v490 = vpop.f32.mrf.mxu0
    %v491 = vadd.f32 0.0, %v490
    %v492 = vpop.f32.mrf.mxu0
    %493 = vdwg.mxu0
    %494 = vmatpush.bf16.msra.mxu0 %v446
    %495 = vmatpush.bf16.msra.mxu0 %v442
    %496 = vmatpush.bf16.msra.mxu0 %v438
    %497 = vmatpush.bf16.msra.mxu0 %v434
    %498 = vmatpush.bf16.msra.mxu0 %v430
    %499 = vmatpush.bf16.msra.mxu0 %v426
    %500 = vmatpush.bf16.msra.mxu0 %v422
    %501 = vmatpush.bf16.msra.mxu0 %v418
    %502 = vmatmul.bf16.gmra.mxu0 %v288
    %v503 = vpop.f32.mrf.mxu0
    %v504 = vadd.f32 0.0, %v503
    %v505 = vpop.f32.mrf.mxu0
    %506 = vdwg.mxu0
    %507 = vmatpush.bf16.msra.mxu0 %v447
    %508 = vmatpush.bf16.msra.mxu0 %v443
    %509 = vmatpush.bf16.msra.mxu0 %v439
    %510 = vmatpush.bf16.msra.mxu0 %v435
    %511 = vmatpush.bf16.msra.mxu0 %v431
    %512 = vmatpush.bf16.msra.mxu0 %v427
    %513 = vmatpush.bf16.msra.mxu0 %v423
    %514 = vmatpush.bf16.msra.mxu0 %v419
    %515 = vmatmul.bf16.gmra.mxu0 %v288
    %v516 = vpop.f32.mrf.mxu0
    %v517 = vadd.f32 0.0, %v516
    %v518 = vpop.f32.mrf.mxu0
    %519 = vdwg.mxu0
    %520 = vmatpush.bf16.msra.mxu0 %v448
    %521 = vmatpush.bf16.msra.mxu0 %v444
    %522 = vmatpush.bf16.msra.mxu0 %v440
    %523 = vmatpush.bf16.msra.mxu0 %v436
    %524 = vmatpush.bf16.msra.mxu0 %v432
    %525 = vmatpush.bf16.msra.mxu0 %v428
    %526 = vmatpush.bf16.msra.mxu0 %v424
    %527 = vmatpush.bf16.msra.mxu0 %v420
    %528 = vmatmul.bf16.gmra.mxu0 %v288
    %v529 = vpop.f32.mrf.mxu0
    %v530 = vadd.f32 0.0, %v529
    %v531 = vpop.f32.mrf.mxu0
    %532 = vdwg.mxu0
    %v533 = vadd.f32 %v284, %v491
    %v534 = vadd.f32 %v285, %v504
    %v535 = vadd.f32 %v286, %v517
    %v536 = vadd.f32 %v287, %v530
    %v537 = vmul.f32 %v533, 0.5
    %v538 = vmul.f32 %v534, 0.5
    %v539 = vmul.f32 %v535, 0.5
    %v540 = vmul.f32 %v536, 0.5
    %v541 = vtanh.pop %v537
    %v542 = vtanh.pop %v538
    %v543 = vtanh.pop %v539
    %v544 = vtanh.pop %v540
    %v545 = vmul.f32 %v541, 0.5
    %v546 = vadd.f32 %v545, 0.5
    %v547 = vmul.f32 %v542, 0.5
    %v548 = vadd.f32 %v547, 0.5
    %v549 = vmul.f32 %v544, 0.5
    %v550 = vadd.f32 %v549, 0.5
    %v551 = vmul.f32 %v548, %v283
    %v552 = vmul.f32 %v546, %v543
    %v553 = vadd.f32 %v551, %v552
    %v554 = vtanh.pop %v553
    %v555 = vmul.f32 %v550, %v554
    %v556 = vld [vmem:[#allocation2 + $0x20] sm:$0xff]
    %v557 = vld [vmem:[#allocation2 + $0x28] sm:$0xff]
    %v558 = vld [vmem:[#allocation2 + $0x30] sm:$0xff]
    %v559 = vld [vmem:[#allocation2 + $0x38] sm:$0xff]
    %v560 = vpack.c.bf16 %v555, %v555
    %561 = vmatpush.bf16.msra.mxu0 %v445
    %562 = vmatpush.bf16.msra.mxu0 %v441
    %563 = vmatpush.bf16.msra.mxu0 %v437
    %564 = vmatpush.bf16.msra.mxu0 %v433
    %565 = vmatpush.bf16.msra.mxu0 %v429
    %566 = vmatpush.bf16.msra.mxu0 %v425
    %567 = vmatpush.bf16.msra.mxu0 %v421
    %568 = vmatpush.bf16.msra.mxu0 %v417
    %569 = vmatmul.bf16.gmra.mxu0 %v560
    %v570 = vpop.f32.mrf.mxu0
    %v571 = vadd.f32 0.0, %v570
    %v572 = vpop.f32.mrf.mxu0
    %573 = vdwg.mxu0
    %574 = vmatpush.bf16.msra.mxu0 %v446
    %575 = vmatpush.bf16.msra.mxu0 %v442
    %576 = vmatpush.bf16.msra.mxu0 %v438
    %577 = vmatpush.bf16.msra.mxu0 %v434
    %578 = vmatpush.bf16.msra.mxu0 %v430
    %579 = vmatpush.bf16.msra.mxu0 %v426
    %580 = vmatpush.bf16.msra.mxu0 %v422
    %581 = vmatpush.bf16.msra.mxu0 %v418
    %582 = vmatmul.bf16.gmra.mxu0 %v560
    %v583 = vpop.f32.mrf.mxu0
    %v584 = vadd.f32 0.0, %v583
    %v585 = vpop.f32.mrf.mxu0
    %586 = vdwg.mxu0
    %587 = vmatpush.bf16.msra.mxu0 %v447
    %588 = vmatpush.bf16.msra.mxu0 %v443
    %589 = vmatpush.bf16.msra.mxu0 %v439
    %590 = vmatpush.bf16.msra.mxu0 %v435
    %591 = vmatpush.bf16.msra.mxu0 %v431
    %592 = vmatpush.bf16.msra.mxu0 %v427
    %593 = vmatpush.bf16.msra.mxu0 %v423
    %594 = vmatpush.bf16.msra.mxu0 %v419
    %595 = vmatmul.bf16.gmra.mxu0 %v560
    %v596 = vpop.f32.mrf.mxu0
    %v597 = vadd.f32 0.0, %v596
    %v598 = vpop.f32.mrf.mxu0
    %599 = vdwg.mxu0
    %600 = vmatpush.bf16.msra.mxu0 %v448
    %601 = vmatpush.bf16.msra.mxu0 %v444
    %602 = vmatpush.bf16.msra.mxu0 %v440
    %603 = vmatpush.bf16.msra.mxu0 %v436
    %604 = vmatpush.bf16.msra.mxu0 %v432
    %605 = vmatpush.bf16.msra.mxu0 %v428
    %606 = vmatpush.bf16.msra.mxu0 %v424
    %607 = vmatpush.bf16.msra.mxu0 %v420
    %608 = vmatmul.bf16.gmra.mxu0 %v560
    %v609 = vpop.f32.mrf.mxu0
    %v610 = vadd.f32 0.0, %v609
    %v611 = vpop.f32.mrf.mxu0
    %612 = vdwg.mxu0
    %v613 = vadd.f32 %v556, %v571
    %v614 = vadd.f32 %v557, %v584
    %v615 = vadd.f32 %v558, %v597
    %v616 = vadd.f32 %v559, %v610
    %v617 = vmul.f32 %v613, 0.5
    %v618 = vmul.f32 %v614, 0.5
    %v619 = vmul.f32 %v615, 0.5
    %v620 = vmul.f32 %v616, 0.5
    %v621 = vtanh.pop %v617
    %v622 = vtanh.pop %v618
    %v623 = vtanh.pop %v619
    %v624 = vtanh.pop %v620
    %v625 = vmul.f32 %v621, 0.5
    %v626 = vadd.f32 %v625, 0.5
    %v627 = vmul.f32 %v622, 0.5
    %v628 = vadd.f32 %v627, 0.5
    %v629 = vmul.f32 %v624, 0.5
    %v630 = vadd.f32 %v629, 0.5
    %v631 = vmul.f32 %v628, %v553
    %v632 = vmul.f32 %v626, %v623
    %v633 = vadd.f32 %v631, %v632
    %v634 = vtanh.pop %v633
    %v635 = vmul.f32 %v630, %v634
    %v636 = vld [vmem:[#allocation2 + $0x40] sm:$0xff]
    %v637 = vld [vmem:[#allocation2 + $0x48] sm:$0xff]
    %v638 = vld [vmem:[#allocation2 + $0x50] sm:$0xff]
    %v639 = vld [vmem:[#allocation2 + $0x58] sm:$0xff]
    %v640 = vpack.c.bf16 %v635, %v635
    %641 = vmatpush.bf16.msra.mxu0 %v445
    %642 = vmatpush.bf16.msra.mxu0 %v441
    %643 = vmatpush.bf16.msra.mxu0 %v437
    %644 = vmatpush.bf16.msra.mxu0 %v433
    %645 = vmatpush.bf16.msra.mxu0 %v429
    %646 = vmatpush.bf16.msra.mxu0 %v425
    %647 = vmatpush.bf16.msra.mxu0 %v421
    %648 = vmatpush.bf16.msra.mxu0 %v417
    %649 = vmatmul.bf16.gmra.mxu0 %v640
    %v650 = vpop.f32.mrf.mxu0
    %v651 = vadd.f32 0.0, %v650
    %v652 = vpop.f32.mrf.mxu0
    %653 = vdwg.mxu0
    %654 = vmatpush.bf16.msra.mxu0 %v446
    %655 = vmatpush.bf16.msra.mxu0 %v442
    %656 = vmatpush.bf16.msra.mxu0 %v438
    %657 = vmatpush.bf16.msra.mxu0 %v434
    %658 = vmatpush.bf16.msra.mxu0 %v430
    %659 = vmatpush.bf16.msra.mxu0 %v426
    %660 = vmatpush.bf16.msra.mxu0 %v422
    %661 = vmatpush.bf16.msra.mxu0 %v418
    %662 = vmatmul.bf16.gmra.mxu0 %v640
    %v663 = vpop.f32.mrf.mxu0
    %v664 = vadd.f32 0.0, %v663
    %v665 = vpop.f32.mrf.mxu0
    %666 = vdwg.mxu0
    %667 = vmatpush.bf16.msra.mxu0 %v447
    %668 = vmatpush.bf16.msra.mxu0 %v443
    %669 = vmatpush.bf16.msra.mxu0 %v439
    %670 = vmatpush.bf16.msra.mxu0 %v435
    %671 = vmatpush.bf16.msra.mxu0 %v431
    %672 = vmatpush.bf16.msra.mxu0 %v427
    %673 = vmatpush.bf16.msra.mxu0 %v423
    %674 = vmatpush.bf16.msra.mxu0 %v419
    %675 = vmatmul.bf16.gmra.mxu0 %v640
    %v676 = vpop.f32.mrf.mxu0
    %v677 = vadd.f32 0.0, %v676
    %v678 = vpop.f32.mrf.mxu0
    %679 = vdwg.mxu0
    %680 = vmatpush.bf16.msra.mxu0 %v448
    %681 = vmatpush.bf16.msra.mxu0 %v444
    %682 = vmatpush.bf16.msra.mxu0 %v440
    %683 = vmatpush.bf16.msra.mxu0 %v436
    %684 = vmatpush.bf16.msra.mxu0 %v432
    %685 = vmatpush.bf16.msra.mxu0 %v428
    %686 = vmatpush.bf16.msra.mxu0 %v424
    %687 = vmatpush.bf16.msra.mxu0 %v420
    %688 = vmatmul.bf16.gmra.mxu0 %v640
    %v689 = vpop.f32.mrf.mxu0
    %v690 = vadd.f32 0.0, %v689
    %v691 = vpop.f32.mrf.mxu0
    %692 = vdwg.mxu0
    %v693 = vadd.f32 %v636, %v651
    %v694 = vadd.f32 %v637, %v664
    %v695 = vadd.f32 %v638, %v677
    %v696 = vadd.f32 %v639, %v690
    %v697 = vmul.f32 %v693, 0.5
    %v698 = vmul.f32 %v694, 0.5
    %v699 = vmul.f32 %v695, 0.5
    %v700 = vmul.f32 %v696, 0.5
    %v701 = vtanh.pop %v697
    %v702 = vtanh.pop %v698
    %v703 = vtanh.pop %v699
    %v704 = vtanh.pop %v700
    %v705 = vmul.f32 %v701, 0.5
    %v706 = vadd.f32 %v705, 0.5
    %v707 = vmul.f32 %v702, 0.5
    %v708 = vadd.f32 %v707, 0.5
    %v709 = vmul.f32 %v704, 0.5
    %v710 = vadd.f32 %v709, 0.5
    %v711 = vmul.f32 %v708, %v633
    %v712 = vmul.f32 %v706, %v703
    %v713 = vadd.f32 %v711, %v712
    %v714 = vtanh.pop %v713
    %v715 = vmul.f32 %v710, %v714
    %v716 = vld [vmem:[#allocation2 + $0x60] sm:$0xff]
    %v717 = vld [vmem:[#allocation2 + $0x68] sm:$0xff]
    %v718 = vld [vmem:[#allocation2 + $0x70] sm:$0xff]
    %v719 = vld [vmem:[#allocation2 + $0x78] sm:$0xff]
    %v720 = vpack.c.bf16 %v715, %v715
    %721 = vmatpush.bf16.msra.mxu0 %v445
    %722 = vmatpush.bf16.msra.mxu0 %v441
    %723 = vmatpush.bf16.msra.mxu0 %v437
    %724 = vmatpush.bf16.msra.mxu0 %v433
    %725 = vmatpush.bf16.msra.mxu0 %v429
    %726 = vmatpush.bf16.msra.mxu0 %v425
    %727 = vmatpush.bf16.msra.mxu0 %v421
    %728 = vmatpush.bf16.msra.mxu0 %v417
    %729 = vmatmul.bf16.gmra.mxu0 %v720
    %v730 = vpop.f32.mrf.mxu0
    %v731 = vadd.f32 0.0, %v730
    %v732 = vpop.f32.mrf.mxu0
    %733 = vdwg.mxu0
    %734 = vmatpush.bf16.msra.mxu0 %v446
    %735 = vmatpush.bf16.msra.mxu0 %v442
    %736 = vmatpush.bf16.msra.mxu0 %v438
    %737 = vmatpush.bf16.msra.mxu0 %v434
    %738 = vmatpush.bf16.msra.mxu0 %v430
    %739 = vmatpush.bf16.msra.mxu0 %v426
    %740 = vmatpush.bf16.msra.mxu0 %v422
    %741 = vmatpush.bf16.msra.mxu0 %v418
    %742 = vmatmul.bf16.gmra.mxu0 %v720
    %v743 = vpop.f32.mrf.mxu0
    %v744 = vadd.f32 0.0, %v743
    %v745 = vpop.f32.mrf.mxu0
    %746 = vdwg.mxu0
    %747 = vmatpush.bf16.msra.mxu0 %v447
    %748 = vmatpush.bf16.msra.mxu0 %v443
    %749 = vmatpush.bf16.msra.mxu0 %v439
    %750 = vmatpush.bf16.msra.mxu0 %v435
    %751 = vmatpush.bf16.msra.mxu0 %v431
    %752 = vmatpush.bf16.msra.mxu0 %v427
    %753 = vmatpush.bf16.msra.mxu0 %v423
    %754 = vmatpush.bf16.msra.mxu0 %v419
    %755 = vmatmul.bf16.gmra.mxu0 %v720
    %v756 = vpop.f32.mrf.mxu0
    %v757 = vadd.f32 0.0, %v756
    %v758 = vpop.f32.mrf.mxu0
    %759 = vdwg.mxu0
    %760 = vmatpush.bf16.msra.mxu0 %v448
    %761 = vmatpush.bf16.msra.mxu0 %v444
    %762 = vmatpush.bf16.msra.mxu0 %v440
    %763 = vmatpush.bf16.msra.mxu0 %v436
    %764 = vmatpush.bf16.msra.mxu0 %v432
    %765 = vmatpush.bf16.msra.mxu0 %v428
    %766 = vmatpush.bf16.msra.mxu0 %v424
    %767 = vmatpush.bf16.msra.mxu0 %v420
    %768 = vmatmul.bf16.gmra.mxu0 %v720
    %v769 = vpop.f32.mrf.mxu0
    %v770 = vadd.f32 0.0, %v769
    %v771 = vpop.f32.mrf.mxu0
    %772 = vdwg.mxu0
    %v773 = vadd.f32 %v716, %v731
    %v774 = vadd.f32 %v717, %v744
    %v775 = vadd.f32 %v718, %v757
    %v776 = vadd.f32 %v719, %v770
    %v777 = vmul.f32 %v773, 0.5
    %v778 = vmul.f32 %v774, 0.5
    %v779 = vmul.f32 %v775, 0.5
    %v780 = vmul.f32 %v776, 0.5
    %v781 = vtanh.pop %v777
    %v782 = vtanh.pop %v778
    %v783 = vtanh.pop %v779
    %v784 = vtanh.pop %v780
    %v785 = vmul.f32 %v781, 0.5
    %v786 = vadd.f32 %v785, 0.5
    %v787 = vmul.f32 %v782, 0.5
    %v788 = vadd.f32 %v787, 0.5
    %v789 = vmul.f32 %v784, 0.5
    %v790 = vadd.f32 %v789, 0.5
    %v791 = vmul.f32 %v788, %v713
    %v792 = vmul.f32 %v786, %v783
    %v793 = vadd.f32 %v791, %v792
    %v794 = vtanh.pop %v793
    %v795 = vmul.f32 %v790, %v794
    %v796 = vld [vmem:[#allocation2 + $0x80] sm:$0xff]
    %v797 = vld [vmem:[#allocation2 + $0x88] sm:$0xff]
    %v798 = vld [vmem:[#allocation2 + $0x90] sm:$0xff]
    %v799 = vld [vmem:[#allocation2 + $0x98] sm:$0xff]
    %v800 = vpack.c.bf16 %v795, %v795
    %801 = vmatpush.bf16.msra.mxu0 %v445
    %802 = vmatpush.bf16.msra.mxu0 %v441
    %803 = vmatpush.bf16.msra.mxu0 %v437
    %804 = vmatpush.bf16.msra.mxu0 %v433
    %805 = vmatpush.bf16.msra.mxu0 %v429
    %806 = vmatpush.bf16.msra.mxu0 %v425
    %807 = vmatpush.bf16.msra.mxu0 %v421
    %808 = vmatpush.bf16.msra.mxu0 %v417
    %809 = vmatmul.bf16.gmra.mxu0 %v800
    %v810 = vpop.f32.mrf.mxu0
    %v811 = vadd.f32 0.0, %v810
    %v812 = vpop.f32.mrf.mxu0
    %813 = vdwg.mxu0
    %814 = vmatpush.bf16.msra.mxu0 %v446
    %815 = vmatpush.bf16.msra.mxu0 %v442
    %816 = vmatpush.bf16.msra.mxu0 %v438
    %817 = vmatpush.bf16.msra.mxu0 %v434
    %818 = vmatpush.bf16.msra.mxu0 %v430
    %819 = vmatpush.bf16.msra.mxu0 %v426
    %820 = vmatpush.bf16.msra.mxu0 %v422
    %821 = vmatpush.bf16.msra.mxu0 %v418
    %822 = vmatmul.bf16.gmra.mxu0 %v800
    %v823 = vpop.f32.mrf.mxu0
    %v824 = vadd.f32 0.0, %v823
    %v825 = vpop.f32.mrf.mxu0
    %826 = vdwg.mxu0
    %827 = vmatpush.bf16.msra.mxu0 %v447
    %828 = vmatpush.bf16.msra.mxu0 %v443
    %829 = vmatpush.bf16.msra.mxu0 %v439
    %830 = vmatpush.bf16.msra.mxu0 %v435
    %831 = vmatpush.bf16.msra.mxu0 %v431
    %832 = vmatpush.bf16.msra.mxu0 %v427
    %833 = vmatpush.bf16.msra.mxu0 %v423
    %834 = vmatpush.bf16.msra.mxu0 %v419
    %835 = vmatmul.bf16.gmra.mxu0 %v800
    %v836 = vpop.f32.mrf.mxu0
    %v837 = vadd.f32 0.0, %v836
    %v838 = vpop.f32.mrf.mxu0
    %839 = vdwg.mxu0
    %840 = vmatpush.bf16.msra.mxu0 %v448
    %841 = vmatpush.bf16.msra.mxu0 %v444
    %842 = vmatpush.bf16.msra.mxu0 %v440
    %843 = vmatpush.bf16.msra.mxu0 %v436
    %844 = vmatpush.bf16.msra.mxu0 %v432
    %845 = vmatpush.bf16.msra.mxu0 %v428
    %846 = vmatpush.bf16.msra.mxu0 %v424
    %847 = vmatpush.bf16.msra.mxu0 %v420
    %848 = vmatmul.bf16.gmra.mxu0 %v800
    %v849 = vpop.f32.mrf.mxu0
    %v850 = vadd.f32 0.0, %v849
    %v851 = vpop.f32.mrf.mxu0
    %852 = vdwg.mxu0
    %v853 = vadd.f32 %v796, %v811
    %v854 = vadd.f32 %v797, %v824
    %v855 = vadd.f32 %v798, %v837
    %v856 = vadd.f32 %v799, %v850
    %v857 = vmul.f32 %v853, 0.5
    %v858 = vmul.f32 %v854, 0.5
    %v859 = vmul.f32 %v855, 0.5
    %v860 = vmul.f32 %v856, 0.5
    %v861 = vtanh.pop %v857
    %v862 = vtanh.pop %v858
    %v863 = vtanh.pop %v859
    %v864 = vtanh.pop %v860
    %v865 = vmul.f32 %v861, 0.5
    %v866 = vadd.f32 %v865, 0.5
    %v867 = vmul.f32 %v862, 0.5
    %v868 = vadd.f32 %v867, 0.5
    %v869 = vmul.f32 %v864, 0.5
    %v870 = vadd.f32 %v869, 0.5
    %v871 = vmul.f32 %v868, %v793
    %v872 = vmul.f32 %v866, %v863
    %v873 = vadd.f32 %v871, %v872
    %v874 = vtanh.pop %v873
    %v875 = vmul.f32 %v870, %v874
    %v876 = vld [vmem:[#allocation2 + $0xa0] sm:$0xff]
    %v877 = vld [vmem:[#allocation2 + $0xa8] sm:$0xff]
    %v878 = vld [vmem:[#allocation2 + $0xb0] sm:$0xff]
    %v879 = vld [vmem:[#allocation2 + $0xb8] sm:$0xff]
    %v880 = vpack.c.bf16 %v875, %v875
    %881 = vmatpush.bf16.msra.mxu0 %v445
    %882 = vmatpush.bf16.msra.mxu0 %v441
    %883 = vmatpush.bf16.msra.mxu0 %v437
    %884 = vmatpush.bf16.msra.mxu0 %v433
    %885 = vmatpush.bf16.msra.mxu0 %v429
    %886 = vmatpush.bf16.msra.mxu0 %v425
    %887 = vmatpush.bf16.msra.mxu0 %v421
    %888 = vmatpush.bf16.msra.mxu0 %v417
    %889 = vmatmul.bf16.gmra.mxu0 %v880
    %v890 = vpop.f32.mrf.mxu0
    %v891 = vadd.f32 0.0, %v890
    %v892 = vpop.f32.mrf.mxu0
    %893 = vdwg.mxu0
    %894 = vmatpush.bf16.msra.mxu0 %v446
    %895 = vmatpush.bf16.msra.mxu0 %v442
    %896 = vmatpush.bf16.msra.mxu0 %v438
    %897 = vmatpush.bf16.msra.mxu0 %v434
    %898 = vmatpush.bf16.msra.mxu0 %v430
    %899 = vmatpush.bf16.msra.mxu0 %v426
    %900 = vmatpush.bf16.msra.mxu0 %v422
    %901 = vmatpush.bf16.msra.mxu0 %v418
    %902 = vmatmul.bf16.gmra.mxu0 %v880
    %v903 = vpop.f32.mrf.mxu0
    %v904 = vadd.f32 0.0, %v903
    %v905 = vpop.f32.mrf.mxu0
    %906 = vdwg.mxu0
    %907 = vmatpush.bf16.msra.mxu0 %v447
    %908 = vmatpush.bf16.msra.mxu0 %v443
    %909 = vmatpush.bf16.msra.mxu0 %v439
    %910 = vmatpush.bf16.msra.mxu0 %v435
    %911 = vmatpush.bf16.msra.mxu0 %v431
    %912 = vmatpush.bf16.msra.mxu0 %v427
    %913 = vmatpush.bf16.msra.mxu0 %v423
    %914 = vmatpush.bf16.msra.mxu0 %v419
    %915 = vmatmul.bf16.gmra.mxu0 %v880
    %v916 = vpop.f32.mrf.mxu0
    %v917 = vadd.f32 0.0, %v916
    %v918 = vpop.f32.mrf.mxu0
    %919 = vdwg.mxu0
    %920 = vmatpush.bf16.msra.mxu0 %v448
    %921 = vmatpush.bf16.msra.mxu0 %v444
    %922 = vmatpush.bf16.msra.mxu0 %v440
    %923 = vmatpush.bf16.msra.mxu0 %v436
    %924 = vmatpush.bf16.msra.mxu0 %v432
    %925 = vmatpush.bf16.msra.mxu0 %v428
    %926 = vmatpush.bf16.msra.mxu0 %v424
    %927 = vmatpush.bf16.msra.mxu0 %v420
    %928 = vmatmul.bf16.gmra.mxu0 %v880
    %v929 = vpop.f32.mrf.mxu0
    %v930 = vadd.f32 0.0, %v929
    %v931 = vpop.f32.mrf.mxu0
    %932 = vdwg.mxu0
    %v933 = vadd.f32 %v876, %v891
    %v934 = vadd.f32 %v877, %v904
    %v935 = vadd.f32 %v878, %v917
    %v936 = vadd.f32 %v879, %v930
    %v937 = vmul.f32 %v933, 0.5
    %v938 = vmul.f32 %v934, 0.5
    %v939 = vmul.f32 %v935, 0.5
    %v940 = vmul.f32 %v936, 0.5
    %v941 = vtanh.pop %v937
    %v942 = vtanh.pop %v938
    %v943 = vtanh.pop %v939
    %v944 = vtanh.pop %v940
    %v945 = vmul.f32 %v941, 0.5
    %v946 = vadd.f32 %v945, 0.5
    %v947 = vmul.f32 %v942, 0.5
    %v948 = vadd.f32 %v947, 0.5
    %v949 = vmul.f32 %v944, 0.5
    %v950 = vadd.f32 %v949, 0.5
    %v951 = vmul.f32 %v948, %v873
    %v952 = vmul.f32 %v946, %v943
    %v953 = vadd.f32 %v951, %v952
    %v954 = vtanh.pop %v953
    %v955 = vmul.f32 %v950, %v954
    %v956 = vld [vmem:[#allocation2 + $0xc0] sm:$0xff]
    %v957 = vld [vmem:[#allocation2 + $0xc8] sm:$0xff]
    %v958 = vld [vmem:[#allocation2 + $0xd0] sm:$0xff]
    %v959 = vld [vmem:[#allocation2 + $0xd8] sm:$0xff]
    %v960 = vpack.c.bf16 %v955, %v955
    %961 = vmatpush.bf16.msra.mxu0 %v445
    %962 = vmatpush.bf16.msra.mxu0 %v441
    %963 = vmatpush.bf16.msra.mxu0 %v437
    %964 = vmatpush.bf16.msra.mxu0 %v433
    %965 = vmatpush.bf16.msra.mxu0 %v429
    %966 = vmatpush.bf16.msra.mxu0 %v425
    %967 = vmatpush.bf16.msra.mxu0 %v421
    %968 = vmatpush.bf16.msra.mxu0 %v417
    %969 = vmatmul.bf16.gmra.mxu0 %v960
    %v970 = vpop.f32.mrf.mxu0
    %v971 = vadd.f32 0.0, %v970
    %v972 = vpop.f32.mrf.mxu0
    %973 = vdwg.mxu0
    %974 = vmatpush.bf16.msra.mxu0 %v446
    %975 = vmatpush.bf16.msra.mxu0 %v442
    %976 = vmatpush.bf16.msra.mxu0 %v438
    %977 = vmatpush.bf16.msra.mxu0 %v434
    %978 = vmatpush.bf16.msra.mxu0 %v430
    %979 = vmatpush.bf16.msra.mxu0 %v426
    %980 = vmatpush.bf16.msra.mxu0 %v422
    %981 = vmatpush.bf16.msra.mxu0 %v418
    %982 = vmatmul.bf16.gmra.mxu0 %v960
    %v983 = vpop.f32.mrf.mxu0
    %v984 = vadd.f32 0.0, %v983
    %v985 = vpop.f32.mrf.mxu0
    %986 = vdwg.mxu0
    %987 = vmatpush.bf16.msra.mxu0 %v447
    %988 = vmatpush.bf16.msra.mxu0 %v443
    %989 = vmatpush.bf16.msra.mxu0 %v439
    %990 = vmatpush.bf16.msra.mxu0 %v435
    %991 = vmatpush.bf16.msra.mxu0 %v431
    %992 = vmatpush.bf16.msra.mxu0 %v427
    %993 = vmatpush.bf16.msra.mxu0 %v423
    %994 = vmatpush.bf16.msra.mxu0 %v419
    %995 = vmatmul.bf16.gmra.mxu0 %v960
    %v996 = vpop.f32.mrf.mxu0
    %v997 = vadd.f32 0.0, %v996
    %v998 = vpop.f32.mrf.mxu0
    %999 = vdwg.mxu0
    %1000 = vmatpush.bf16.msra.mxu0 %v448
    %1001 = vmatpush.bf16.msra.mxu0 %v444
    %1002 = vmatpush.bf16.msra.mxu0 %v440
    %1003 = vmatpush.bf16.msra.mxu0 %v436
    %1004 = vmatpush.bf16.msra.mxu0 %v432
    %1005 = vmatpush.bf16.msra.mxu0 %v428
    %1006 = vmatpush.bf16.msra.mxu0 %v424
    %1007 = vmatpush.bf16.msra.mxu0 %v420
    %1008 = vmatmul.bf16.gmra.mxu0 %v960
    %v1009 = vpop.f32.mrf.mxu0
    %v1010 = vadd.f32 0.0, %v1009
    %v1011 = vpop.f32.mrf.mxu0
    %1012 = vdwg.mxu0
    %v1013 = vadd.f32 %v956, %v971
    %v1014 = vadd.f32 %v957, %v984
    %v1015 = vadd.f32 %v958, %v997
    %v1016 = vadd.f32 %v959, %v1010
    %v1017 = vmul.f32 %v1013, 0.5
    %v1018 = vmul.f32 %v1014, 0.5
    %v1019 = vmul.f32 %v1015, 0.5
    %v1020 = vmul.f32 %v1016, 0.5
    %v1021 = vtanh.pop %v1017
    %v1022 = vtanh.pop %v1018
    %v1023 = vtanh.pop %v1019
    %v1024 = vtanh.pop %v1020
    %v1025 = vmul.f32 %v1021, 0.5
    %v1026 = vadd.f32 %v1025, 0.5
    %v1027 = vmul.f32 %v1022, 0.5
    %v1028 = vadd.f32 %v1027, 0.5
    %v1029 = vmul.f32 %v1024, 0.5
    %v1030 = vadd.f32 %v1029, 0.5
    %v1031 = vmul.f32 %v1028, %v953
    %v1032 = vmul.f32 %v1026, %v1023
    %v1033 = vadd.f32 %v1031, %v1032
    %v1034 = vtanh.pop %v1033
    %v1035 = vmul.f32 %v1030, %v1034
    %v1036 = vld [vmem:[#allocation2 + $0xe0] sm:$0xff]
    %v1037 = vld [vmem:[#allocation2 + $0xe8] sm:$0xff]
    %v1038 = vld [vmem:[#allocation2 + $0xf0] sm:$0xff]
    %v1039 = vld [vmem:[#allocation2 + $0xf8] sm:$0xff]
    %v1040 = vpack.c.bf16 %v1035, %v1035
    %1041 = vmatpush.bf16.msra.mxu0 %v445
    %1042 = vmatpush.bf16.msra.mxu0 %v441
    %1043 = vmatpush.bf16.msra.mxu0 %v437
    %1044 = vmatpush.bf16.msra.mxu0 %v433
    %1045 = vmatpush.bf16.msra.mxu0 %v429
    %1046 = vmatpush.bf16.msra.mxu0 %v425
    %1047 = vmatpush.bf16.msra.mxu0 %v421
    %1048 = vmatpush.bf16.msra.mxu0 %v417
    %1049 = vmatmul.bf16.gmra.mxu0 %v1040
    %v1050 = vpop.f32.mrf.mxu0
    %v1051 = vadd.f32 0.0, %v1050
    %v1052 = vpop.f32.mrf.mxu0
    %1053 = vdwg.mxu0
    %1054 = vmatpush.bf16.msra.mxu0 %v446
    %1055 = vmatpush.bf16.msra.mxu0 %v442
    %1056 = vmatpush.bf16.msra.mxu0 %v438
    %1057 = vmatpush.bf16.msra.mxu0 %v434
    %1058 = vmatpush.bf16.msra.mxu0 %v430
    %1059 = vmatpush.bf16.msra.mxu0 %v426
    %1060 = vmatpush.bf16.msra.mxu0 %v422
    %1061 = vmatpush.bf16.msra.mxu0 %v418
    %1062 = vmatmul.bf16.gmra.mxu0 %v1040
    %v1063 = vpop.f32.mrf.mxu0
    %v1064 = vadd.f32 0.0, %v1063
    %v1065 = vpop.f32.mrf.mxu0
    %1066 = vdwg.mxu0
    %1067 = vmatpush.bf16.msra.mxu0 %v447
    %1068 = vmatpush.bf16.msra.mxu0 %v443
    %1069 = vmatpush.bf16.msra.mxu0 %v439
    %1070 = vmatpush.bf16.msra.mxu0 %v435
    %1071 = vmatpush.bf16.msra.mxu0 %v431
    %1072 = vmatpush.bf16.msra.mxu0 %v427
    %1073 = vmatpush.bf16.msra.mxu0 %v423
    %1074 = vmatpush.bf16.msra.mxu0 %v419
    %1075 = vmatmul.bf16.gmra.mxu0 %v1040
    %v1076 = vpop.f32.mrf.mxu0
    %v1077 = vadd.f32 0.0, %v1076
    %v1078 = vpop.f32.mrf.mxu0
    %1079 = vdwg.mxu0
    %1080 = vmatpush.bf16.msra.mxu0 %v448
    %1081 = vmatpush.bf16.msra.mxu0 %v444
    %1082 = vmatpush.bf16.msra.mxu0 %v440
    %1083 = vmatpush.bf16.msra.mxu0 %v436
    %1084 = vmatpush.bf16.msra.mxu0 %v432
    %1085 = vmatpush.bf16.msra.mxu0 %v428
    %1086 = vmatpush.bf16.msra.mxu0 %v424
    %1087 = vmatpush.bf16.msra.mxu0 %v420
    %1088 = vmatmul.bf16.gmra.mxu0 %v1040
    %v1089 = vpop.f32.mrf.mxu0
    %v1090 = vadd.f32 0.0, %v1089
    %v1091 = vpop.f32.mrf.mxu0
    %1092 = vdwg.mxu0
    %v1093 = vadd.f32 %v1036, %v1051
    %v1094 = vadd.f32 %v1037, %v1064
    %v1095 = vadd.f32 %v1038, %v1077
    %v1096 = vadd.f32 %v1039, %v1090
    %v1097 = vmul.f32 %v1093, 0.5
    %v1098 = vmul.f32 %v1094, 0.5
    %v1099 = vmul.f32 %v1095, 0.5
    %v1100 = vmul.f32 %v1096, 0.5
    %v1101 = vtanh.pop %v1097
    %v1102 = vtanh.pop %v1098
    %v1103 = vtanh.pop %v1099
    %v1104 = vtanh.pop %v1100
    %v1105 = vmul.f32 %v1101, 0.5
    %v1106 = vadd.f32 %v1105, 0.5
    %v1107 = vmul.f32 %v1102, 0.5
    %v1108 = vadd.f32 %v1107, 0.5
    %v1109 = vmul.f32 %v1104, 0.5
    %v1110 = vadd.f32 %v1109, 0.5
    %v1111 = vmul.f32 %v1108, %v1033
    %v1112 = vmul.f32 %v1106, %v1103
    %v1113 = vadd.f32 %v1111, %v1112
    %v1114 = vtanh.pop %v1113
    %v1115 = vmul.f32 %v1110, %v1114
    %v1116 = vpack.c.bf16 %v1115, %v1115
    %v1117 = vld [vmem:[#allocation6] sm:$0xf]
    %v1118 = vld [vmem:[#allocation6 + $0x4] sm:$0xf]
    %v1119 = vld [vmem:[#allocation6 + $0x8] sm:$0xf]
    %v1120 = vld [vmem:[#allocation6 + $0xc] sm:$0xf]
    %v1121 = vld [vmem:[#allocation6 + $0x10] sm:$0xf]
    %v1122 = vld [vmem:[#allocation6 + $0x14] sm:$0xf]
    %v1123 = vld [vmem:[#allocation6 + $0x18] sm:$0xf]
    %v1124 = vld [vmem:[#allocation6 + $0x1c] sm:$0xf]
    %v1125 = vld [vmem:[#allocation6 + $0x20] sm:$0xf]
    %v1126 = vld [vmem:[#allocation6 + $0x24] sm:$0xf]
    %v1127 = vld [vmem:[#allocation6 + $0x28] sm:$0xf]
    %v1128 = vld [vmem:[#allocation6 + $0x2c] sm:$0xf]
    %v1129 = vld [vmem:[#allocation6 + $0x30] sm:$0xf]
    %v1130 = vld [vmem:[#allocation6 + $0x34] sm:$0xf]
    %v1131 = vld [vmem:[#allocation6 + $0x38] sm:$0xf]
    %v1132 = vld [vmem:[#allocation6 + $0x3c] sm:$0xf]
    %v1133 = vld [vmem:[%s7] sm:$0x1]
    %v1135 = vperm.slane %v1133, 0
    %v1153 = vunpack.c.l.b16 %v1117
    %v1154 = vunpack.c.l.b16 %v1118
    %v1155 = vunpack.c.l.b16 %v1119
    %v1156 = vunpack.c.l.b16 %v1120
    %v1157 = vunpack.c.l.b16 %v1121
    %v1158 = vunpack.c.l.b16 %v1122
    %v1159 = vunpack.c.l.b16 %v1123
    %v1160 = vunpack.c.l.b16 %v1124
    %v1161 = vunpack.c.l.b16 %v1125
    %v1162 = vunpack.c.l.b16 %v1126
    %v1163 = vunpack.c.l.b16 %v1127
    %v1164 = vunpack.c.l.b16 %v1128
    %v1165 = vunpack.c.l.b16 %v1129
    %v1166 = vunpack.c.l.b16 %v1130
    %v1167 = vunpack.c.l.b16 %v1131
    %v1168 = vunpack.c.l.b16 %v1132
    %v1169 = vpack.c.b16 %v1154, %v1153
    %v1170 = vpack.c.b16 %v1156, %v1155
    %v1171 = vpack.c.b16 %v1158, %v1157
    %v1172 = vpack.c.b16 %v1160, %v1159
    %v1173 = vpack.c.b16 %v1162, %v1161
    %v1174 = vpack.c.b16 %v1164, %v1163
    %v1175 = vpack.c.b16 %v1166, %v1165
    %v1176 = vpack.c.b16 %v1168, %v1167
    %1185 = vmatpush.bf16.msra.mxu0 %v1176
    %1186 = vmatpush.bf16.msra.mxu0 %v1175
    %1187 = vmatpush.bf16.msra.mxu0 %v1174
    %1188 = vmatpush.bf16.msra.mxu0 %v1173
    %1189 = vmatpush.bf16.msra.mxu0 %v1172
    %1190 = vmatpush.bf16.msra.mxu0 %v1171
    %1191 = vmatpush.bf16.msra.mxu0 %v1170
    %1192 = vmatpush.bf16.msra.mxu0 %v1169
    %1193 = vmatmul.bf16.gmra.mxu0 %v1116
    %v1194 = vpop.f32.mrf.mxu0
    %v1195 = vadd.f32 %v1135, %v1194
    %v1196 = vpop.f32.mrf.mxu0
    %1197 = vdwg.mxu0
    %1198 = vst [vmem:[#allocation8] sm:$0xff] %v1195
    %1199 = vst [vmem:[#allocation9] sm:$0xff] %v1115
    %1200 = vst [vmem:[#allocation11] sm:$0xff] %v1113
    // Predicated region
    $region42: #{tpu_custom_call.1} parent=1 // pred_check
      _
    $region43: #{tpu_custom_call.1} parent=1 // pred_check_branch
      %1202 = sbr.rel (0) target = $region45
    $region44: #{tpu_custom_call.1} parent=1 // pred_region
      %1204 = vsyncadd [#allocation5], 0
      %s1206 = sshll.u32 [#allocation8], 4
      %s1207 = int_to_ptr.vmem [resolvable:$true] %s1206
      %s1208 = sshll.u32 %s8, 4
      %s1209 = int_to_ptr.hbm [resolvable:$true] %s1208
      %1211 = dma.vmem_to_hbm [thread:$0]  %s1207, 128, %s1209, [#allocation5]
    $region45: #{tpu_custom_call.1} parent=1 // pred_fallthru
      _
    // Predicated region
    $region46: #{tpu_custom_call.1} parent=1 // pred_check
      _
    $region47: #{tpu_custom_call.1} parent=1 // pred_check_branch
      %1213 = sbr.rel (0) target = $region49
    $region48: #{tpu_custom_call.1} parent=1 // pred_region
      %1215 = vsyncadd [#allocation10], 0
      %s1217 = sshll.u32 [#allocation9], 4
      %s1218 = int_to_ptr.vmem [resolvable:$true] %s1217
      %s1219 = sshll.u32 %s9, 4
      %s1220 = int_to_ptr.hbm [resolvable:$true] %s1219
      %1222 = dma.vmem_to_hbm [thread:$0]  %s1218, 128, %s1220, [#allocation10]
    $region49: #{tpu_custom_call.1} parent=1 // pred_fallthru
      _
    // Predicated region
    $region50: #{tpu_custom_call.1} parent=1 // pred_check
      _
    $region51: #{tpu_custom_call.1} parent=1 // pred_check_branch
      %1224 = sbr.rel (0) target = $region53
    $region52: #{tpu_custom_call.1} parent=1 // pred_region
      %1226 = vsyncadd [#allocation10], 0
      %s1228 = sshll.u32 [#allocation11], 4
      %s1229 = int_to_ptr.vmem [resolvable:$true] %s1228
      %s1230 = sshll.u32 %s10, 4
      %s1231 = int_to_ptr.hbm [resolvable:$true] %s1230
      %1233 = dma.vmem_to_hbm [thread:$0]  %s1229, 128, %s1231, [#allocation10]
    $region53: #{tpu_custom_call.1} parent=1 // pred_fallthru
      _
    // Predicated region
    $region54: #{tpu_custom_call.1} parent=1 // pred_check
      _
    $region55: #{tpu_custom_call.1} parent=1 // pred_check_branch
      %1235 = sbr.rel (0) target = $region57
    $region56: #{tpu_custom_call.1} parent=1 // pred_region
      %1237 = dma.done [#allocation5], 128
    $region57: #{tpu_custom_call.1} parent=1 // pred_fallthru
      _
    // Predicated region
    $region58: #{tpu_custom_call.1} parent=1 // pred_check
      _
    $region59: #{tpu_custom_call.1} parent=1 // pred_check_branch
      %1239 = sbr.rel (0) target = $region61
    $region60: #{tpu_custom_call.1} parent=1 // pred_region
      %1241 = dma.done [#allocation10], 128
    $region61: #{tpu_custom_call.1} parent=1 // pred_fallthru
      _
    // Predicated region
    $region62: #{tpu_custom_call.1} parent=1 // pred_check
      _
    $region63: #{tpu_custom_call.1} parent=1 // pred_check_branch
      %1243 = sbr.rel (0) target = $region65
    $region64: #{tpu_custom_call.1} parent=1 // pred_region
      %1245 = dma.done [#allocation10], 128
    $region65: #{tpu_custom_call.1} parent=1 // pred_fallthru
      _
    %1246 = vsyncpa [#allocation4], 1
    %1247 = vsyncpa [#allocation7], 1
    %1248 = vsyncpa [#allocation5], 1
    %1249 = vsyncpa [#allocation10], 1

</llo_original>
